<compile_context>
chip_gen: v5e
topology: v5e:2x2
jax: 0.10.0
libtpu: 0.0.40
codegen_flags: <defaults>
</compile_context>

<pallas_src>
import functools
import math

import jax
import jax.numpy as jnp
from jax.experimental import pallas as pl
from jax.experimental.pallas import tpu as pltpu

_IN = 360          # input features
_HID = 180         # true hidden width
_HID_PAD = 256     # hidden padded to 2 full lane-vregs / one 256-wide MXU tile
_INV_SQRT2 = 1.0 / math.sqrt(2.0)


def _round_up(n, m):
    return ((n + m - 1) // m) * m


def _fc3_kernel(x_ref, w1_ref, b1_ref, w2_ref, b2_ref, o_ref, *, precision):
    x = x_ref[...]
    if x.dtype != w1_ref.dtype:
        x = x.astype(w1_ref.dtype)          # per-tile VPU cast (free vs. HBM/MXU cost)
    # Layer 1 on the MXU: (tb, 360) @ (360, 256), f32 accumulate.
    h = jnp.dot(x, w1_ref[...], preferred_element_type=jnp.float32,
                precision=precision)
    h = h + b1_ref[...]                      # (1, 256) broadcast; padded cols stay 0
    # Exact (erf-based) GELU, matching torch.nn.GELU() default. erf -> EUP, muls -> VPU.
    h = 0.5 * h * (1.0 + jax.lax.erf(h * _INV_SQRT2))
    # Layer 2 OFF the MXU: VPU multiply + XLU cross-lane reduce -> per-row scalar.
    # Padded hidden cols contribute 0 (GELU(0)=0 and w2 pad is 0).
    out = jnp.sum(h * w2_ref[...], axis=-1, keepdims=True) + b2_ref[...]
    o_ref[...] = out.astype(o_ref.dtype)     # (tb, 1): only 4 B/row of HBM writeback


def _pick_tile(batch, tile_b):
    """Batch tile: multiple of 16, <= tile_b, and >=2 grid steps when B allows it."""
    tile_b = max(16, _round_up(int(tile_b), 16))
    if batch <= 16:
        return _round_up(batch, 8)
    half = _round_up(-(-batch // 2), 16)     # ceil(B/2), 16-aligned -> >= 2 tiles
    return max(16, min(tile_b, half))


@functools.partial(jax.jit, static_argnames=("tile_b", "matmul_dtype"))
def fc3_forward(x, w1, b1, w2, b2, *, tile_b=2048, matmul_dtype=jnp.bfloat16):
    """x: (B, 360); w1: (360, 180); b1: (180,); w2: (180, 1); b2: (1,). Returns (B, 1) f32."""
    B = x.shape[0]
    tb = _pick_tile(B, tile_b)
    num_tiles = pl.cdiv(B, tb)               # ragged edge handled by Pallas (no x pad)

    # Weights/biases prepared once (tiny; resident in VMEM across all grid steps).
    #   w1: (360,180)->(360,256) in matmul_dtype; b1: (180,)->(1,256) f32
    #   w2: (180,1)->(1,256) f32 row vector;      b2: (1,)->(1,1) f32
    w1_p = jnp.pad(w1, ((0, 0), (0, _HID_PAD - _HID))).astype(matmul_dtype)
    b1_p = jnp.pad(b1.reshape(1, -1), ((0, 0), (0, _HID_PAD - _HID))).astype(jnp.float32)
    w2_row = jnp.pad(w2.reshape(1, -1), ((0, 0), (0, _HID_PAD - _HID))).astype(jnp.float32)
    b2_p = b2.reshape(1, 1).astype(jnp.float32)

    # Pin matmul precision: full f32 when running the exact path; default for bf16.
    if w1_p.dtype == jnp.float32:
        precision = jax.lax.Precision.HIGHEST
    else:
        precision = None
    kernel = functools.partial(_fc3_kernel, precision=precision)

    x_bytes = x.size * x.dtype.itemsize
    w_bytes = (w1_p.size * w1_p.dtype.itemsize + 4 * (b1_p.size + w2_row.size + b2_p.size))
    cost = pl.CostEstimate(
        flops=2 * B * _IN * _HID_PAD + 2 * B * _HID_PAD,
        transcendentals=B * _HID_PAD,
        bytes_accessed=x_bytes + w_bytes + B * 4,
    )

    return pl.pallas_call(
        kernel,
        out_shape=jax.ShapeDtypeStruct((B, 1), jnp.float32),
        grid=(num_tiles,),
        in_specs=[
            pl.BlockSpec((tb, _IN), lambda i: (i, 0)),        # x: streamed per tile
            pl.BlockSpec((_IN, _HID_PAD), lambda i: (0, 0)),  # w1: resident
            pl.BlockSpec((1, _HID_PAD), lambda i: (0, 0)),    # b1: resident
            pl.BlockSpec((1, _HID_PAD), lambda i: (0, 0)),    # w2 row: resident
            pl.BlockSpec((1, 1), lambda i: (0, 0)),           # b2: resident
        ],
        out_specs=pl.BlockSpec((tb, 1), lambda i: (i, 0)),
        compiler_params=pltpu.CompilerParams(
            # "parallel" lets the runtime shard batch tiles across v7x's 2 TCs;
            # pltpu.CORE_PARALLEL is a possible further tweak on dual-TC parts.
            dimension_semantics=("parallel",),
            vmem_limit_bytes=48 << 20,
        ),
        cost_estimate=cost,
    )(x, w1_p, b1_p, w2_row, b2_p)


def init_params(key):
    """Deterministic init mimicking nn.Linear's U(-1/sqrt(fan_in), +1/sqrt(fan_in))."""
    k1, k2, k3, k4 = jax.random.split(key, 4)
    bound1 = 1.0 / math.sqrt(360.0)
    bound2 = 1.0 / math.sqrt(180.0)
    # Stored as (in, out) so the kernel avoids transposes.
    w1 = jax.random.uniform(k1, (360, 180), jnp.float32, -bound1, bound1)
    b1 = jax.random.uniform(k2, (180,), jnp.float32, -bound1, bound1)
    w2 = jax.random.uniform(k3, (180, 1), jnp.float32, -bound2, bound2)
    b2 = jax.random.uniform(k4, (1,), jnp.float32, -bound2, bound2)
    return w1, b1, w2, b2


def fc3_reference(x, w1, b1, w2, b2):
    hi = jax.lax.Precision.HIGHEST
    h = jnp.dot(x.astype(jnp.float32), w1, precision=hi) + b1
    h = 0.5 * h * (1.0 + jax.lax.erf(h / math.sqrt(2.0)))
    return jnp.dot(h, w2, precision=hi) + b2


if __name__ == "__main__":
    key = jax.random.PRNGKey(0)
    kx, kp, kx2 = jax.random.split(key, 3)
    w1, b1, w2, b2 = init_params(kp)

    # 1) Exact f32 path (precision pinned to HIGHEST), single grid step.
    x = jax.random.normal(kx, (8, 360), jnp.float32)
    out = jax.block_until_ready(fc3_forward(x, w1, b1, w2, b2, matmul_dtype=jnp.float32))
    ref = fc3_reference(x, w1, b1, w2, b2)
    assert out.shape == (8, 1), out.shape
    assert jnp.allclose(out, ref, atol=1e-5, rtol=1e-5), float(jnp.max(jnp.abs(out - ref)))

    # 2) Default bf16-MXU path, multi-tile ragged batch (1000 -> 2 tiles of 512,
    #    no host-side padding of x; edge rows are discarded by the output DMA).
    x2 = jax.random.normal(kx2, (1000, 360), jnp.float32)
    out2 = jax.block_until_ready(fc3_forward(x2, w1, b1, w2, b2))
    ref2 = fc3_reference(x2, w1, b1, w2, b2)
    assert out2.shape == (1000, 1), out2.shape
    err2 = float(jnp.max(jnp.abs(out2 - ref2)))
    assert err2 < 3e-2, err2

    # 3) bf16-streamed x (halves HBM reads on the bandwidth-bound v6e/v7x when the
    #    producer already emits bf16 activations).
    out3 = jax.block_until_ready(fc3_forward(x2.astype(jnp.bfloat16), w1, b1, w2, b2))
    assert out3.shape == (1000, 1), out3.shape
    err3 = float(jnp.max(jnp.abs(out3 - ref2)))
    assert err3 < 5e-2, err3

    print("KERNEL_OK")
</pallas_src>

<mosaic_0001>
module attributes {stable_mosaic.version = 11 : i64} {
  func.func @_fc3_kernel(%arg0: i32, %arg1: memref<8x360xf32, #tpu.memory_space<vmem>>, %arg2: memref<360x256xf32, #tpu.memory_space<vmem>>, %arg3: memref<1x256xf32, #tpu.memory_space<vmem>>, %arg4: memref<1x256xf32, #tpu.memory_space<vmem>>, %arg5: memref<1x1xf32, #tpu.memory_space<vmem>>, %arg6: memref<8x1xf32, #tpu.memory_space<vmem>>) attributes {dimension_semantics = [#tpu.dimension_semantics<parallel>], iteration_bounds = array<i64: 1>, scalar_prefetch = 0 : i64, scratch_operands = 0 : i64, tpu.core_type = #tpu.core_type<tc>, window_params = [{transform_indices = @transform_0, window_bounds = array<i64: 8, 360>}, {pipeline_mode = #tpu.pipeline_mode<synchronous>, transform_indices = @transform_1, window_bounds = array<i64: 360, 256>}, {pipeline_mode = #tpu.pipeline_mode<synchronous>, transform_indices = @transform_2, window_bounds = array<i64: 1, 256>}, {pipeline_mode = #tpu.pipeline_mode<synchronous>, transform_indices = @transform_3, window_bounds = array<i64: 1, 256>}, {pipeline_mode = #tpu.pipeline_mode<synchronous>, transform_indices = @transform_4, window_bounds = array<i64: 1, 1>}, {transform_indices = @transform_5, window_bounds = array<i64: 8, 1>}]} {
    %c0 = arith.constant 0 : index
    %c0_0 = arith.constant 0 : index
    %0 = vector.load %arg1[%c0, %c0_0] : memref<8x360xf32, #tpu.memory_space<vmem>>, vector<8x360xf32>
    %c0_1 = arith.constant 0 : index
    %c0_2 = arith.constant 0 : index
    %1 = vector.load %arg2[%c0_1, %c0_2] : memref<360x256xf32, #tpu.memory_space<vmem>>, vector<360x256xf32>
    %cst = arith.constant dense<0.000000e+00> : vector<8x256xf32>
    %2 = tpu.matmul %0, %1, %cst {dimension_numbers = #tpu.dot_dimension_numbers<[1], [0], [0], [1], [0, 0, 1, 1], [], []>, precision = #tpu.contract_precision<fp32>} : vector<8x360xf32>, vector<360x256xf32>, vector<8x256xf32> -> vector<8x256xf32>
    %c0_3 = arith.constant 0 : index
    %c0_4 = arith.constant 0 : index
    %3 = vector.load %arg3[%c0_3, %c0_4] : memref<1x256xf32, #tpu.memory_space<vmem>>, vector<1x256xf32>
    %4 = vector.broadcast %3 : vector<1x256xf32> to vector<8x256xf32>
    %5 = arith.addf %2, %4 : vector<8x256xf32>
    %cst_5 = arith.constant 5.000000e-01 : f32
    %6 = vector.broadcast %cst_5 : f32 to vector<8x256xf32>
    %7 = arith.mulf %6, %5 : vector<8x256xf32>
    %cst_6 = arith.constant 0.707106769 : f32
    %8 = vector.broadcast %cst_6 : f32 to vector<8x256xf32>
    %9 = arith.mulf %5, %8 : vector<8x256xf32>
    %10 = math.erf %9 : vector<8x256xf32>
    %cst_7 = arith.constant 1.000000e+00 : f32
    %11 = vector.broadcast %cst_7 : f32 to vector<8x256xf32>
    %12 = arith.addf %11, %10 : vector<8x256xf32>
    %13 = arith.mulf %7, %12 : vector<8x256xf32>
    %c0_8 = arith.constant 0 : index
    %c0_9 = arith.constant 0 : index
    %14 = vector.load %arg4[%c0_8, %c0_9] : memref<1x256xf32, #tpu.memory_space<vmem>>, vector<1x256xf32>
    %15 = vector.broadcast %14 : vector<1x256xf32> to vector<8x256xf32>
    %16 = arith.mulf %13, %15 : vector<8x256xf32>
    %cst_10 = arith.constant dense<0.000000e+00> : vector<8xf32>
    %17 = vector.multi_reduction <add>, %16, %cst_10 [1] : vector<8x256xf32> to vector<8xf32>
    %18 = vector.shape_cast %17 : vector<8xf32> to vector<8x1xf32>
    %c0_11 = arith.constant 0 : index
    %c0_12 = arith.constant 0 : index
    %19 = vector.load %arg5[%c0_11, %c0_12] : memref<1x1xf32, #tpu.memory_space<vmem>>, vector<1x1xf32>
    %20 = vector.broadcast %19 : vector<1x1xf32> to vector<8x1xf32>
    %21 = arith.addf %18, %20 : vector<8x1xf32>
    %c0_13 = arith.constant 0 : index
    %c0_14 = arith.constant 0 : index
    %22 = vector.load %arg6[%c0_13, %c0_14] : memref<8x1xf32, #tpu.memory_space<vmem>>, vector<8x1xf32>
    tpu.vector_store %arg6[%c0_13, %c0_14], %21 {strides = array<i32>} : memref<8x1xf32, #tpu.memory_space<vmem>>, vector<8x1xf32>,
    return
  }
  func.func @transform_0(%arg0: i32) -> (i32, i32) {
    %c0_i32 = arith.constant 0 : i32
    %c0_i32_0 = arith.constant 0 : i32
    return %arg0, %c0_i32 : i32, i32
  }
  func.func @transform_1(%arg0: i32) -> (i32, i32) {
    %c0_i32 = arith.constant 0 : i32
    %c0_i32_0 = arith.constant 0 : i32
    %c0_i32_1 = arith.constant 0 : i32
    return %c0_i32, %c0_i32_0 : i32, i32
  }
  func.func @transform_2(%arg0: i32) -> (i32, i32) {
    %c0_i32 = arith.constant 0 : i32
    %c0_i32_0 = arith.constant 0 : i32
    %c0_i32_1 = arith.constant 0 : i32
    return %c0_i32, %c0_i32_0 : i32, i32
  }
  func.func @transform_3(%arg0: i32) -> (i32, i32) {
    %c0_i32 = arith.constant 0 : i32
    %c0_i32_0 = arith.constant 0 : i32
    %c0_i32_1 = arith.constant 0 : i32
    return %c0_i32, %c0_i32_0 : i32, i32
  }
  func.func @transform_4(%arg0: i32) -> (i32, i32) {
    %c0_i32 = arith.constant 0 : i32
    %c0_i32_0 = arith.constant 0 : i32
    %c0_i32_1 = arith.constant 0 : i32
    return %c0_i32, %c0_i32_0 : i32, i32
  }
  func.func @transform_5(%arg0: i32) -> (i32, i32) {
    %c0_i32 = arith.constant 0 : i32
    %c0_i32_0 = arith.constant 0 : i32
    return %arg0, %c0_i32 : i32, i32
  }
}

</mosaic_0001>

<llo_original>
// kernel: fc3_forward.1
$region0: #{fc3_forward.1}
  #allocation0 [shape = 'u32[]', space=smem, size = 0x4, offset = 0x4, fixed_abs, tag = 'smem constant byte address 0x4 - core index']
  #allocation1 [shape = 'u32[72,128]{1,0:T(1,128)}', space=vmem, size = 0x9000, scoped, tag = 'internal scratch']
  #allocation2 [shape = 'f32[1,1]{1,0:T(1,128)S(1)}', space=vmem, size = 0x200, scoped, tag = 'scoped memory for fc3_forward.1']
  %s0 = inlined_call_operand.vmem [shape: f32[8,360], index: 0, kind: input, shape index: {}]
  %s1 = inlined_call_operand.vmem [shape: f32[360,256], index: 1, kind: input, shape index: {}]
  %s2 = inlined_call_operand.vmem [shape: f32[1,256], index: 2, kind: input, shape index: {}]
  %s3 = inlined_call_operand.vmem [shape: f32[1,256], index: 3, kind: input, shape index: {}]
  %s4 = inlined_call_operand.<no memory space> [shape: f32[1,1], index: 4, kind: input, shape index: {}]
  %s5 = inlined_call_operand.vmem [shape: f32[8,1], index: 5, kind: output, shape index: {}]
  %s6 = sld [smem:[#allocation0]]
  $region30: #{fc3_forward.1} parent=0
    _
  %s8 = ssub.s32 1, %s6
  %s9 = scalar_select 0, %s8, %s6
  %v10 = vstv %s4
  %11 = vst [vmem:[#allocation2] sm:$0x1] %v10
  // Predicated region
  $region2: #{fc3_forward.1} parent=0 // pred_check
    _
  $region3: #{fc3_forward.1} parent=0 // pred_check_branch
    %13 = sbr.rel (0) target = $region5
  $region4: #{fc3_forward.1} parent=0 // pred_region
    _
  $region5: #{fc3_forward.1} parent=0 // pred_fallthru
    _
  // Predicated region
  $region6: #{fc3_forward.1} parent=0 // pred_check
    _
  $region7: #{fc3_forward.1} parent=0 // pred_check_branch
    %15 = sbr.rel (0) target = $region9
  $region8: #{fc3_forward.1} parent=0 // pred_region
    _
  $region9: #{fc3_forward.1} parent=0 // pred_fallthru
    _
  // Predicated region
  $region10: #{fc3_forward.1} parent=0 // pred_check
    _
  $region11: #{fc3_forward.1} parent=0 // pred_check_branch
    %17 = sbr.rel (0) target = $region13
  $region12: #{fc3_forward.1} parent=0 // pred_region
    _
  $region13: #{fc3_forward.1} parent=0 // pred_fallthru
    _
  // Predicated region
  $region14: #{fc3_forward.1} parent=0 // pred_check
    _
  $region15: #{fc3_forward.1} parent=0 // pred_check_branch
    %19 = sbr.rel (0) target = $region17
  $region16: #{fc3_forward.1} parent=0 // pred_region
    _
  $region17: #{fc3_forward.1} parent=0 // pred_fallthru
    _
  // Predicated region
  $region18: #{fc3_forward.1} parent=0 // pred_check
    _
  $region19: #{fc3_forward.1} parent=0 // pred_check_branch
    %21 = sbr.rel (0) target = $region21
  $region20: #{fc3_forward.1} parent=0 // pred_region
    _
  $region21: #{fc3_forward.1} parent=0 // pred_fallthru
    _
  %v22 = vld [vmem:[%s0] sm:$0xff]
  %v23 = vld [vmem:[%s0 + $0x8] sm:$0xff]
  %v24 = vld [vmem:[%s0 + $0x10] sm:$0xff]
  %v25 = vld [vmem:[%s1] sm:$0xff]
  %v26 = vld [vmem:[%s1 + $0x8] sm:$0xff]
  %v27 = vld [vmem:[%s1 + $0x10] sm:$0xff]
  %v28 = vld [vmem:[%s1 + $0x18] sm:$0xff]
  %v29 = vld [vmem:[%s1 + $0x20] sm:$0xff]
  %v30 = vld [vmem:[%s1 + $0x28] sm:$0xff]
  %v31 = vld [vmem:[%s1 + $0x30] sm:$0xff]
  %v32 = vld [vmem:[%s1 + $0x38] sm:$0xff]
  %v33 = vld [vmem:[%s1 + $0x40] sm:$0xff]
  %v34 = vld [vmem:[%s1 + $0x48] sm:$0xff]
  %v35 = vld [vmem:[%s1 + $0x50] sm:$0xff]
  %v36 = vld [vmem:[%s1 + $0x58] sm:$0xff]
  %v37 = vld [vmem:[%s1 + $0x60] sm:$0xff]
  %v38 = vld [vmem:[%s1 + $0x68] sm:$0xff]
  %v39 = vld [vmem:[%s1 + $0x70] sm:$0xff]
  %v40 = vld [vmem:[%s1 + $0x78] sm:$0xff]
  %v41 = vld [vmem:[%s1 + $0x80] sm:$0xff]
  %v42 = vld [vmem:[%s1 + $0x88] sm:$0xff]
  %v43 = vld [vmem:[%s1 + $0x90] sm:$0xff]
  %v44 = vld [vmem:[%s1 + $0x98] sm:$0xff]
  %v45 = vld [vmem:[%s1 + $0xa0] sm:$0xff]
  %v46 = vld [vmem:[%s1 + $0xa8] sm:$0xff]
  %v47 = vld [vmem:[%s1 + $0xb0] sm:$0xff]
  %v48 = vld [vmem:[%s1 + $0xb8] sm:$0xff]
  %v49 = vld [vmem:[%s1 + $0xc0] sm:$0xff]
  %v50 = vld [vmem:[%s1 + $0xc8] sm:$0xff]
  %v51 = vld [vmem:[%s1 + $0xd0] sm:$0xff]
  %v52 = vld [vmem:[%s1 + $0xd8] sm:$0xff]
  %v53 = vld [vmem:[%s1 + $0xe0] sm:$0xff]
  %v54 = vld [vmem:[%s1 + $0xe8] sm:$0xff]
  %v55 = vld [vmem:[%s1 + $0xf0] sm:$0xff]
  %v56 = vld [vmem:[%s1 + $0xf8] sm:$0xff]
  %v57 = vld [vmem:[%s1 + $0x100] sm:$0xff]
  %v58 = vld [vmem:[%s1 + $0x108] sm:$0xff]
  %v59 = vld [vmem:[%s1 + $0x110] sm:$0xff]
  %v60 = vld [vmem:[%s1 + $0x118] sm:$0xff]
  %v61 = vld [vmem:[%s1 + $0x120] sm:$0xff]
  %v62 = vld [vmem:[%s1 + $0x128] sm:$0xff]
  %v63 = vld [vmem:[%s1 + $0x130] sm:$0xff]
  %v64 = vld [vmem:[%s1 + $0x138] sm:$0xff]
  %v65 = vld [vmem:[%s1 + $0x140] sm:$0xff]
  %v66 = vld [vmem:[%s1 + $0x148] sm:$0xff]
  %v67 = vld [vmem:[%s1 + $0x150] sm:$0xff]
  %v68 = vld [vmem:[%s1 + $0x158] sm:$0xff]
  %v69 = vld [vmem:[%s1 + $0x160] sm:$0xff]
  %v70 = vld [vmem:[%s1 + $0x168] sm:$0xff]
  %v71 = vld [vmem:[%s1 + $0x170] sm:$0xff]
  %v72 = vld [vmem:[%s1 + $0x178] sm:$0xff]
  %v73 = vld [vmem:[%s1 + $0x180] sm:$0xff]
  %v74 = vld [vmem:[%s1 + $0x188] sm:$0xff]
  %v75 = vld [vmem:[%s1 + $0x190] sm:$0xff]
  %v76 = vld [vmem:[%s1 + $0x198] sm:$0xff]
  %v77 = vld [vmem:[%s1 + $0x1a0] sm:$0xff]
  %v78 = vld [vmem:[%s1 + $0x1a8] sm:$0xff]
  %v79 = vld [vmem:[%s1 + $0x1b0] sm:$0xff]
  %v80 = vld [vmem:[%s1 + $0x1b8] sm:$0xff]
  %v81 = vld [vmem:[%s1 + $0x1c0] sm:$0xff]
  %v82 = vld [vmem:[%s1 + $0x1c8] sm:$0xff]
  %v83 = vld [vmem:[%s1 + $0x1d0] sm:$0xff]
  %v84 = vld [vmem:[%s1 + $0x1d8] sm:$0xff]
  %v85 = vld [vmem:[%s1 + $0x1e0] sm:$0xff]
  %v86 = vld [vmem:[%s1 + $0x1e8] sm:$0xff]
  %v87 = vld [vmem:[%s1 + $0x1f0] sm:$0xff]
  %v88 = vld [vmem:[%s1 + $0x1f8] sm:$0xff]
  %v89 = vld [vmem:[%s1 + $0x200] sm:$0xff]
  %v90 = vld [vmem:[%s1 + $0x208] sm:$0xff]
  %v91 = vld [vmem:[%s1 + $0x210] sm:$0xff]
  %v92 = vld [vmem:[%s1 + $0x218] sm:$0xff]
  %v93 = vld [vmem:[%s1 + $0x220] sm:$0xff]
  %v94 = vld [vmem:[%s1 + $0x228] sm:$0xff]
  %v95 = vld [vmem:[%s1 + $0x230] sm:$0xff]
  %v96 = vld [vmem:[%s1 + $0x238] sm:$0xff]
  %v97 = vld [vmem:[%s1 + $0x240] sm:$0xff]
  %v98 = vld [vmem:[%s1 + $0x248] sm:$0xff]
  %v99 = vld [vmem:[%s1 + $0x250] sm:$0xff]
  %v100 = vld [vmem:[%s1 + $0x258] sm:$0xff]
  %v101 = vld [vmem:[%s1 + $0x260] sm:$0xff]
  %v102 = vld [vmem:[%s1 + $0x268] sm:$0xff]
  %v103 = vld [vmem:[%s1 + $0x270] sm:$0xff]
  %v104 = vld [vmem:[%s1 + $0x278] sm:$0xff]
  %v105 = vld [vmem:[%s1 + $0x280] sm:$0xff]
  %v106 = vld [vmem:[%s1 + $0x288] sm:$0xff]
  %v107 = vld [vmem:[%s1 + $0x290] sm:$0xff]
  %v108 = vld [vmem:[%s1 + $0x298] sm:$0xff]
  %v109 = vld [vmem:[%s1 + $0x2a0] sm:$0xff]
  %v110 = vld [vmem:[%s1 + $0x2a8] sm:$0xff]
  %v111 = vld [vmem:[%s1 + $0x2b0] sm:$0xff]
  %v112 = vld [vmem:[%s1 + $0x2b8] sm:$0xff]
  %v113 = vld [vmem:[%s1 + $0x2c0] sm:$0xff]
  %v114 = vld [vmem:[%s1 + $0x2c8] sm:$0xff]
  %v115 = vld [vmem:[%s2] sm:$0x3]
  %v117 = vperm.slane %v115, 0
  %v118 = vperm.slane %v115, 1
  %vm121 = vcmask 850944
  %v123 = vsel %vm121, %v24, 0
  %v125 = vand.u32 %v55, 4294901760
  %126 = vmatpush.msra.mxu0 %v125
  %v127 = vand.u32 %v53, 4294901760
  %128 = vmatpush.msra.mxu0 %v127
  %v129 = vand.u32 %v51, 4294901760
  %130 = vmatpush.msra.mxu0 %v129
  %v131 = vand.u32 %v49, 4294901760
  %132 = vmatpush.msra.mxu0 %v131
  %v133 = vand.u32 %v47, 4294901760
  %134 = vmatpush.msra.mxu0 %v133
  %v135 = vand.u32 %v45, 4294901760
  %136 = vmatpush.msra.mxu0 %v135
  %v137 = vand.u32 %v43, 4294901760
  %138 = vmatpush.msra.mxu0 %v137
  %v139 = vand.u32 %v41, 4294901760
  %140 = vmatpush.msra.mxu0 %v139
  %v141 = vand.u32 %v39, 4294901760
  %142 = vmatpush.msra.mxu0 %v141
  %v143 = vand.u32 %v37, 4294901760
  %144 = vmatpush.msra.mxu0 %v143
  %v145 = vand.u32 %v35, 4294901760
  %146 = vmatpush.msra.mxu0 %v145
  %v147 = vand.u32 %v33, 4294901760
  %148 = vmatpush.msra.mxu0 %v147
  %v149 = vand.u32 %v31, 4294901760
  %150 = vmatpush.msra.mxu0 %v149
  %v151 = vand.u32 %v29, 4294901760
  %152 = vmatpush.msra.mxu0 %v151
  %v153 = vand.u32 %v27, 4294901760
  %154 = vmatpush.msra.mxu0 %v153
  %v155 = vand.u32 %v25, 4294901760
  %156 = vmatpush.msra.mxu0 %v155
  %v157 = vand.u32 %v22, 4294901760
  %v158 = vsub.f32 %v22, %v157
  %v159 = vand.u32 %v158, 4294901760
  %v160 = vsub.f32 %v158, %v159
  %v161 = vand.u32 %v160, 4294901760
  %162 = vmatmul.f32.gmra.mxu0 %v161
  %v163 = vpop.f32.mrf.mxu0
  %v164 = vadd.f32 %v117, %v163
  %165 = vdwg.mxu0
  %v166 = vand.u32 %v55, 4294901760
  %v167 = vsub.f32 %v55, %v166
  %v168 = vand.u32 %v167, 4294901760
  %v169 = vsub.f32 %v167, %v168
  %v170 = vand.u32 %v169, 4294901760
  %171 = vmatpush.msra.mxu0 %v170
  %v172 = vand.u32 %v53, 4294901760
  %v173 = vsub.f32 %v53, %v172
  %v174 = vand.u32 %v173, 4294901760
  %v175 = vsub.f32 %v173, %v174
  %v176 = vand.u32 %v175, 4294901760
  %177 = vmatpush.msra.mxu0 %v176
  %v178 = vand.u32 %v51, 4294901760
  %v179 = vsub.f32 %v51, %v178
  %v180 = vand.u32 %v179, 4294901760
  %v181 = vsub.f32 %v179, %v180
  %v182 = vand.u32 %v181, 4294901760
  %183 = vmatpush.msra.mxu0 %v182
  %v184 = vand.u32 %v49, 4294901760
  %v185 = vsub.f32 %v49, %v184
  %v186 = vand.u32 %v185, 4294901760
  %v187 = vsub.f32 %v185, %v186
  %v188 = vand.u32 %v187, 4294901760
  %189 = vmatpush.msra.mxu0 %v188
  %v190 = vand.u32 %v47, 4294901760
  %v191 = vsub.f32 %v47, %v190
  %v192 = vand.u32 %v191, 4294901760
  %v193 = vsub.f32 %v191, %v192
  %v194 = vand.u32 %v193, 4294901760
  %195 = vmatpush.msra.mxu0 %v194
  %v196 = vand.u32 %v45, 4294901760
  %v197 = vsub.f32 %v45, %v196
  %v198 = vand.u32 %v197, 4294901760
  %v199 = vsub.f32 %v197, %v198
  %v200 = vand.u32 %v199, 4294901760
  %201 = vmatpush.msra.mxu0 %v200
  %v202 = vand.u32 %v43, 4294901760
  %v203 = vsub.f32 %v43, %v202
  %v204 = vand.u32 %v203, 4294901760
  %v205 = vsub.f32 %v203, %v204
  %v206 = vand.u32 %v205, 4294901760
  %207 = vmatpush.msra.mxu0 %v206
  %v208 = vand.u32 %v41, 4294901760
  %v209 = vsub.f32 %v41, %v208
  %v210 = vand.u32 %v209, 4294901760
  %v211 = vsub.f32 %v209, %v210
  %v212 = vand.u32 %v211, 4294901760
  %213 = vmatpush.msra.mxu0 %v212
  %v214 = vand.u32 %v39, 4294901760
  %v215 = vsub.f32 %v39, %v214
  %v216 = vand.u32 %v215, 4294901760
  %v217 = vsub.f32 %v215, %v216
  %v218 = vand.u32 %v217, 4294901760
  %219 = vmatpush.msra.mxu0 %v218
  %v220 = vand.u32 %v37, 4294901760
  %v221 = vsub.f32 %v37, %v220
  %v222 = vand.u32 %v221, 4294901760
  %v223 = vsub.f32 %v221, %v222
  %v224 = vand.u32 %v223, 4294901760
  %225 = vmatpush.msra.mxu0 %v224
  %v226 = vand.u32 %v35, 4294901760
  %v227 = vsub.f32 %v35, %v226
  %v228 = vand.u32 %v227, 4294901760
  %v229 = vsub.f32 %v227, %v228
  %v230 = vand.u32 %v229, 4294901760
  %231 = vmatpush.msra.mxu0 %v230
  %v232 = vand.u32 %v33, 4294901760
  %v233 = vsub.f32 %v33, %v232
  %v234 = vand.u32 %v233, 4294901760
  %v235 = vsub.f32 %v233, %v234
  %v236 = vand.u32 %v235, 4294901760
  %237 = vmatpush.msra.mxu0 %v236
  %v238 = vand.u32 %v31, 4294901760
  %v239 = vsub.f32 %v31, %v238
  %v240 = vand.u32 %v239, 4294901760
  %v241 = vsub.f32 %v239, %v240
  %v242 = vand.u32 %v241, 4294901760
  %243 = vmatpush.msra.mxu0 %v242
  %v244 = vand.u32 %v29, 4294901760
  %v245 = vsub.f32 %v29, %v244
  %v246 = vand.u32 %v245, 4294901760
  %v247 = vsub.f32 %v245, %v246
  %v248 = vand.u32 %v247, 4294901760
  %249 = vmatpush.msra.mxu0 %v248
  %v250 = vand.u32 %v27, 4294901760
  %v251 = vsub.f32 %v27, %v250
  %v252 = vand.u32 %v251, 4294901760
  %v253 = vsub.f32 %v251, %v252
  %v254 = vand.u32 %v253, 4294901760
  %255 = vmatpush.msra.mxu0 %v254
  %v256 = vand.u32 %v25, 4294901760
  %v257 = vsub.f32 %v25, %v256
  %v258 = vand.u32 %v257, 4294901760
  %v259 = vsub.f32 %v257, %v258
  %v260 = vand.u32 %v259, 4294901760
  %261 = vmatpush.msra.mxu0 %v260
  %v262 = vand.u32 %v22, 4294901760
  %263 = vmatmul.f32.gmra.mxu0 %v262
  %v264 = vpop.f32.mrf.mxu0
  %v265 = vadd.f32 %v164, %v264
  %266 = vdwg.mxu0
  %v267 = vand.u32 %v55, 4294901760
  %v268 = vsub.f32 %v55, %v267
  %269 = vmatpush.msra.mxu0 %v268
  %v270 = vand.u32 %v53, 4294901760
  %v271 = vsub.f32 %v53, %v270
  %272 = vmatpush.msra.mxu0 %v271
  %v273 = vand.u32 %v51, 4294901760
  %v274 = vsub.f32 %v51, %v273
  %275 = vmatpush.msra.mxu0 %v274
  %v276 = vand.u32 %v49, 4294901760
  %v277 = vsub.f32 %v49, %v276
  %278 = vmatpush.msra.mxu0 %v277
  %v279 = vand.u32 %v47, 4294901760
  %v280 = vsub.f32 %v47, %v279
  %281 = vmatpush.msra.mxu0 %v280
  %v282 = vand.u32 %v45, 4294901760
  %v283 = vsub.f32 %v45, %v282
  %284 = vmatpush.msra.mxu0 %v283
  %v285 = vand.u32 %v43, 4294901760
  %v286 = vsub.f32 %v43, %v285
  %287 = vmatpush.msra.mxu0 %v286
  %v288 = vand.u32 %v41, 4294901760
  %v289 = vsub.f32 %v41, %v288
  %290 = vmatpush.msra.mxu0 %v289
  %v291 = vand.u32 %v39, 4294901760
  %v292 = vsub.f32 %v39, %v291
  %293 = vmatpush.msra.mxu0 %v292
  %v294 = vand.u32 %v37, 4294901760
  %v295 = vsub.f32 %v37, %v294
  %296 = vmatpush.msra.mxu0 %v295
  %v297 = vand.u32 %v35, 4294901760
  %v298 = vsub.f32 %v35, %v297
  %299 = vmatpush.msra.mxu0 %v298
  %v300 = vand.u32 %v33, 4294901760
  %v301 = vsub.f32 %v33, %v300
  %302 = vmatpush.msra.mxu0 %v301
  %v303 = vand.u32 %v31, 4294901760
  %v304 = vsub.f32 %v31, %v303
  %305 = vmatpush.msra.mxu0 %v304
  %v306 = vand.u32 %v29, 4294901760
  %v307 = vsub.f32 %v29, %v306
  %308 = vmatpush.msra.mxu0 %v307
  %v309 = vand.u32 %v27, 4294901760
  %v310 = vsub.f32 %v27, %v309
  %311 = vmatpush.msra.mxu0 %v310
  %v312 = vand.u32 %v25, 4294901760
  %v313 = vsub.f32 %v25, %v312
  %314 = vmatpush.msra.mxu0 %v313
  %v315 = vand.u32 %v22, 4294901760
  %v316 = vsub.f32 %v22, %v315
  %317 = vmatmul.f32.gmra.mxu0 %v316
  %v318 = vpop.f32.mrf.mxu0
  %v319 = vadd.f32 %v265, %v318
  %320 = vdwg.mxu0
  %v321 = vand.u32 %v55, 4294901760
  %322 = vmatpush.msra.mxu0 %v321
  %v323 = vand.u32 %v53, 4294901760
  %324 = vmatpush.msra.mxu0 %v323
  %v325 = vand.u32 %v51, 4294901760
  %326 = vmatpush.msra.mxu0 %v325
  %v327 = vand.u32 %v49, 4294901760
  %328 = vmatpush.msra.mxu0 %v327
  %v329 = vand.u32 %v47, 4294901760
  %330 = vmatpush.msra.mxu0 %v329
  %v331 = vand.u32 %v45, 4294901760
  %332 = vmatpush.msra.mxu0 %v331
  %v333 = vand.u32 %v43, 4294901760
  %334 = vmatpush.msra.mxu0 %v333
  %v335 = vand.u32 %v41, 4294901760
  %336 = vmatpush.msra.mxu0 %v335
  %v337 = vand.u32 %v39, 4294901760
  %338 = vmatpush.msra.mxu0 %v337
  %v339 = vand.u32 %v37, 4294901760
  %340 = vmatpush.msra.mxu0 %v339
  %v341 = vand.u32 %v35, 4294901760
  %342 = vmatpush.msra.mxu0 %v341
  %v343 = vand.u32 %v33, 4294901760
  %344 = vmatpush.msra.mxu0 %v343
  %v345 = vand.u32 %v31, 4294901760
  %346 = vmatpush.msra.mxu0 %v345
  %v347 = vand.u32 %v29, 4294901760
  %348 = vmatpush.msra.mxu0 %v347
  %v349 = vand.u32 %v27, 4294901760
  %350 = vmatpush.msra.mxu0 %v349
  %v351 = vand.u32 %v25, 4294901760
  %352 = vmatpush.msra.mxu0 %v351
  %v353 = vand.u32 %v22, 4294901760
  %v354 = vsub.f32 %v22, %v353
  %v355 = vand.u32 %v354, 4294901760
  %356 = vmatmul.f32.gmra.mxu0 %v355
  %v357 = vpop.f32.mrf.mxu0
  %v358 = vadd.f32 %v319, %v357
  %359 = vdwg.mxu0
  %v360 = vand.u32 %v55, 4294901760
  %v361 = vsub.f32 %v55, %v360
  %v362 = vand.u32 %v361, 4294901760
  %363 = vmatpush.msra.mxu0 %v362
  %v364 = vand.u32 %v53, 4294901760
  %v365 = vsub.f32 %v53, %v364
  %v366 = vand.u32 %v365, 4294901760
  %367 = vmatpush.msra.mxu0 %v366
  %v368 = vand.u32 %v51, 4294901760
  %v369 = vsub.f32 %v51, %v368
  %v370 = vand.u32 %v369, 4294901760
  %371 = vmatpush.msra.mxu0 %v370
  %v372 = vand.u32 %v49, 4294901760
  %v373 = vsub.f32 %v49, %v372
  %v374 = vand.u32 %v373, 4294901760
  %375 = vmatpush.msra.mxu0 %v374
  %v376 = vand.u32 %v47, 4294901760
  %v377 = vsub.f32 %v47, %v376
  %v378 = vand.u32 %v377, 4294901760
  %379 = vmatpush.msra.mxu0 %v378
  %v380 = vand.u32 %v45, 4294901760
  %v381 = vsub.f32 %v45, %v380
  %v382 = vand.u32 %v381, 4294901760
  %383 = vmatpush.msra.mxu0 %v382
  %v384 = vand.u32 %v43, 4294901760
  %v385 = vsub.f32 %v43, %v384
  %v386 = vand.u32 %v385, 4294901760
  %387 = vmatpush.msra.mxu0 %v386
  %v388 = vand.u32 %v41, 4294901760
  %v389 = vsub.f32 %v41, %v388
  %v390 = vand.u32 %v389, 4294901760
  %391 = vmatpush.msra.mxu0 %v390
  %v392 = vand.u32 %v39, 4294901760
  %v393 = vsub.f32 %v39, %v392
  %v394 = vand.u32 %v393, 4294901760
  %395 = vmatpush.msra.mxu0 %v394
  %v396 = vand.u32 %v37, 4294901760
  %v397 = vsub.f32 %v37, %v396
  %v398 = vand.u32 %v397, 4294901760
  %399 = vmatpush.msra.mxu0 %v398
  %v400 = vand.u32 %v35, 4294901760
  %v401 = vsub.f32 %v35, %v400
  %v402 = vand.u32 %v401, 4294901760
  %403 = vmatpush.msra.mxu0 %v402
  %v404 = vand.u32 %v33, 4294901760
  %v405 = vsub.f32 %v33, %v404
  %v406 = vand.u32 %v405, 4294901760
  %407 = vmatpush.msra.mxu0 %v406
  %v408 = vand.u32 %v31, 4294901760
  %v409 = vsub.f32 %v31, %v408
  %v410 = vand.u32 %v409, 4294901760
  %411 = vmatpush.msra.mxu0 %v410
  %v412 = vand.u32 %v29, 4294901760
  %v413 = vsub.f32 %v29, %v412
  %v414 = vand.u32 %v413, 4294901760
  %415 = vmatpush.msra.mxu0 %v414
  %v416 = vand.u32 %v27, 4294901760
  %v417 = vsub.f32 %v27, %v416
  %v418 = vand.u32 %v417, 4294901760
  %419 = vmatpush.msra.mxu0 %v418
  %v420 = vand.u32 %v25, 4294901760
  %v421 = vsub.f32 %v25, %v420
  %v422 = vand.u32 %v421, 4294901760
  %423 = vmatpush.msra.mxu0 %v422
  %v424 = vand.u32 %v22, 4294901760
  %425 = vmatmul.f32.gmra.mxu0 %v424
  %v426 = vpop.f32.mrf.mxu0
  %v427 = vadd.f32 %v358, %v426
  %428 = vdwg.mxu0
  %v429 = vand.u32 %v55, 4294901760
  %430 = vmatpush.msra.mxu0 %v429
  %v431 = vand.u32 %v53, 4294901760
  %432 = vmatpush.msra.mxu0 %v431
  %v433 = vand.u32 %v51, 4294901760
  %434 = vmatpush.msra.mxu0 %v433
  %v435 = vand.u32 %v49, 4294901760
  %436 = vmatpush.msra.mxu0 %v435
  %v437 = vand.u32 %v47, 4294901760
  %438 = vmatpush.msra.mxu0 %v437
  %v439 = vand.u32 %v45, 4294901760
  %440 = vmatpush.msra.mxu0 %v439
  %v441 = vand.u32 %v43, 4294901760
  %442 = vmatpush.msra.mxu0 %v441
  %v443 = vand.u32 %v41, 4294901760
  %444 = vmatpush.msra.mxu0 %v443
  %v445 = vand.u32 %v39, 4294901760
  %446 = vmatpush.msra.mxu0 %v445
  %v447 = vand.u32 %v37, 4294901760
  %448 = vmatpush.msra.mxu0 %v447
  %v449 = vand.u32 %v35, 4294901760
  %450 = vmatpush.msra.mxu0 %v449
  %v451 = vand.u32 %v33, 4294901760
  %452 = vmatpush.msra.mxu0 %v451
  %v453 = vand.u32 %v31, 4294901760
  %454 = vmatpush.msra.mxu0 %v453
  %v455 = vand.u32 %v29, 4294901760
  %456 = vmatpush.msra.mxu0 %v455
  %v457 = vand.u32 %v27, 4294901760
  %458 = vmatpush.msra.mxu0 %v457
  %v459 = vand.u32 %v25, 4294901760
  %460 = vmatpush.msra.mxu0 %v459
  %v461 = vand.u32 %v22, 4294901760
  %462 = vmatmul.f32.gmra.mxu0 %v461
  %v463 = vpop.f32.mrf.mxu0
  %v464 = vadd.f32 %v427, %v463
  %465 = vdwg.mxu0
  %v466 = vand.u32 %v87, 4294901760
  %467 = vmatpush.msra.mxu0 %v466
  %v468 = vand.u32 %v85, 4294901760
  %469 = vmatpush.msra.mxu0 %v468
  %v470 = vand.u32 %v83, 4294901760
  %471 = vmatpush.msra.mxu0 %v470
  %v472 = vand.u32 %v81, 4294901760
  %473 = vmatpush.msra.mxu0 %v472
  %v474 = vand.u32 %v79, 4294901760
  %475 = vmatpush.msra.mxu0 %v474
  %v476 = vand.u32 %v77, 4294901760
  %477 = vmatpush.msra.mxu0 %v476
  %v478 = vand.u32 %v75, 4294901760
  %479 = vmatpush.msra.mxu0 %v478
  %v480 = vand.u32 %v73, 4294901760
  %481 = vmatpush.msra.mxu0 %v480
  %v482 = vand.u32 %v71, 4294901760
  %483 = vmatpush.msra.mxu0 %v482
  %v484 = vand.u32 %v69, 4294901760
  %485 = vmatpush.msra.mxu0 %v484
  %v486 = vand.u32 %v67, 4294901760
  %487 = vmatpush.msra.mxu0 %v486
  %v488 = vand.u32 %v65, 4294901760
  %489 = vmatpush.msra.mxu0 %v488
  %v490 = vand.u32 %v63, 4294901760
  %491 = vmatpush.msra.mxu0 %v490
  %v492 = vand.u32 %v61, 4294901760
  %493 = vmatpush.msra.mxu0 %v492
  %v494 = vand.u32 %v59, 4294901760
  %495 = vmatpush.msra.mxu0 %v494
  %v496 = vand.u32 %v57, 4294901760
  %497 = vmatpush.msra.mxu0 %v496
  %v498 = vand.u32 %v23, 4294901760
  %v499 = vsub.f32 %v23, %v498
  %v500 = vand.u32 %v499, 4294901760
  %v501 = vsub.f32 %v499, %v500
  %v502 = vand.u32 %v501, 4294901760
  %503 = vmatmul.f32.gmra.mxu0 %v502
  %v504 = vpop.f32.mrf.mxu0
  %v505 = vadd.f32 %v464, %v504
  %506 = vdwg.mxu0
  %v507 = vand.u32 %v87, 4294901760
  %v508 = vsub.f32 %v87, %v507
  %v509 = vand.u32 %v508, 4294901760
  %v510 = vsub.f32 %v508, %v509
  %v511 = vand.u32 %v510, 4294901760
  %512 = vmatpush.msra.mxu0 %v511
  %v513 = vand.u32 %v85, 4294901760
  %v514 = vsub.f32 %v85, %v513
  %v515 = vand.u32 %v514, 4294901760
  %v516 = vsub.f32 %v514, %v515
  %v517 = vand.u32 %v516, 4294901760
  %518 = vmatpush.msra.mxu0 %v517
  %v519 = vand.u32 %v83, 4294901760
  %v520 = vsub.f32 %v83, %v519
  %v521 = vand.u32 %v520, 4294901760
  %v522 = vsub.f32 %v520, %v521
  %v523 = vand.u32 %v522, 4294901760
  %524 = vmatpush.msra.mxu0 %v523
  %v525 = vand.u32 %v81, 4294901760
  %v526 = vsub.f32 %v81, %v525
  %v527 = vand.u32 %v526, 4294901760
  %v528 = vsub.f32 %v526, %v527
  %v529 = vand.u32 %v528, 4294901760
  %530 = vmatpush.msra.mxu0 %v529
  %v531 = vand.u32 %v79, 4294901760
  %v532 = vsub.f32 %v79, %v531
  %v533 = vand.u32 %v532, 4294901760
  %v534 = vsub.f32 %v532, %v533
  %v535 = vand.u32 %v534, 4294901760
  %536 = vmatpush.msra.mxu0 %v535
  %v537 = vand.u32 %v77, 4294901760
  %v538 = vsub.f32 %v77, %v537
  %v539 = vand.u32 %v538, 4294901760
  %v540 = vsub.f32 %v538, %v539
  %v541 = vand.u32 %v540, 4294901760
  %542 = vmatpush.msra.mxu0 %v541
  %v543 = vand.u32 %v75, 4294901760
  %v544 = vsub.f32 %v75, %v543
  %v545 = vand.u32 %v544, 4294901760
  %v546 = vsub.f32 %v544, %v545
  %v547 = vand.u32 %v546, 4294901760
  %548 = vmatpush.msra.mxu0 %v547
  %v549 = vand.u32 %v73, 4294901760
  %v550 = vsub.f32 %v73, %v549
  %v551 = vand.u32 %v550, 4294901760
  %v552 = vsub.f32 %v550, %v551
  %v553 = vand.u32 %v552, 4294901760
  %554 = vmatpush.msra.mxu0 %v553
  %v555 = vand.u32 %v71, 4294901760
  %v556 = vsub.f32 %v71, %v555
  %v557 = vand.u32 %v556, 4294901760
  %v558 = vsub.f32 %v556, %v557
  %v559 = vand.u32 %v558, 4294901760
  %560 = vmatpush.msra.mxu0 %v559
  %v561 = vand.u32 %v69, 4294901760
  %v562 = vsub.f32 %v69, %v561
  %v563 = vand.u32 %v562, 4294901760
  %v564 = vsub.f32 %v562, %v563
  %v565 = vand.u32 %v564, 4294901760
  %566 = vmatpush.msra.mxu0 %v565
  %v567 = vand.u32 %v67, 4294901760
  %v568 = vsub.f32 %v67, %v567
  %v569 = vand.u32 %v568, 4294901760
  %v570 = vsub.f32 %v568, %v569
  %v571 = vand.u32 %v570, 4294901760
  %572 = vmatpush.msra.mxu0 %v571
  %v573 = vand.u32 %v65, 4294901760
  %v574 = vsub.f32 %v65, %v573
  %v575 = vand.u32 %v574, 4294901760
  %v576 = vsub.f32 %v574, %v575
  %v577 = vand.u32 %v576, 4294901760
  %578 = vmatpush.msra.mxu0 %v577
  %v579 = vand.u32 %v63, 4294901760
  %v580 = vsub.f32 %v63, %v579
  %v581 = vand.u32 %v580, 4294901760
  %v582 = vsub.f32 %v580, %v581
  %v583 = vand.u32 %v582, 4294901760
  %584 = vmatpush.msra.mxu0 %v583
  %v585 = vand.u32 %v61, 4294901760
  %v586 = vsub.f32 %v61, %v585
  %v587 = vand.u32 %v586, 4294901760
  %v588 = vsub.f32 %v586, %v587
  %v589 = vand.u32 %v588, 4294901760
  %590 = vmatpush.msra.mxu0 %v589
  %v591 = vand.u32 %v59, 4294901760
  %v592 = vsub.f32 %v59, %v591
  %v593 = vand.u32 %v592, 4294901760
  %v594 = vsub.f32 %v592, %v593
  %v595 = vand.u32 %v594, 4294901760
  %596 = vmatpush.msra.mxu0 %v595
  %v597 = vand.u32 %v57, 4294901760
  %v598 = vsub.f32 %v57, %v597
  %v599 = vand.u32 %v598, 4294901760
  %v600 = vsub.f32 %v598, %v599
  %v601 = vand.u32 %v600, 4294901760
  %602 = vmatpush.msra.mxu0 %v601
  %v603 = vand.u32 %v23, 4294901760
  %604 = vmatmul.f32.gmra.mxu0 %v603
  %v605 = vpop.f32.mrf.mxu0
  %v606 = vadd.f32 %v505, %v605
  %607 = vdwg.mxu0
  %v608 = vand.u32 %v87, 4294901760
  %v609 = vsub.f32 %v87, %v608
  %610 = vmatpush.msra.mxu0 %v609
  %v611 = vand.u32 %v85, 4294901760
  %v612 = vsub.f32 %v85, %v611
  %613 = vmatpush.msra.mxu0 %v612
  %v614 = vand.u32 %v83, 4294901760
  %v615 = vsub.f32 %v83, %v614
  %616 = vmatpush.msra.mxu0 %v615
  %v617 = vand.u32 %v81, 4294901760
  %v618 = vsub.f32 %v81, %v617
  %619 = vmatpush.msra.mxu0 %v618
  %v620 = vand.u32 %v79, 4294901760
  %v621 = vsub.f32 %v79, %v620
  %622 = vmatpush.msra.mxu0 %v621
  %v623 = vand.u32 %v77, 4294901760
  %v624 = vsub.f32 %v77, %v623
  %625 = vmatpush.msra.mxu0 %v624
  %v626 = vand.u32 %v75, 4294901760
  %v627 = vsub.f32 %v75, %v626
  %628 = vmatpush.msra.mxu0 %v627
  %v629 = vand.u32 %v73, 4294901760
  %v630 = vsub.f32 %v73, %v629
  %631 = vmatpush.msra.mxu0 %v630
  %v632 = vand.u32 %v71, 4294901760
  %v633 = vsub.f32 %v71, %v632
  %634 = vmatpush.msra.mxu0 %v633
  %v635 = vand.u32 %v69, 4294901760
  %v636 = vsub.f32 %v69, %v635
  %637 = vmatpush.msra.mxu0 %v636
  %v638 = vand.u32 %v67, 4294901760
  %v639 = vsub.f32 %v67, %v638
  %640 = vmatpush.msra.mxu0 %v639
  %v641 = vand.u32 %v65, 4294901760
  %v642 = vsub.f32 %v65, %v641
  %643 = vmatpush.msra.mxu0 %v642
  %v644 = vand.u32 %v63, 4294901760
  %v645 = vsub.f32 %v63, %v644
  %646 = vmatpush.msra.mxu0 %v645
  %v647 = vand.u32 %v61, 4294901760
  %v648 = vsub.f32 %v61, %v647
  %649 = vmatpush.msra.mxu0 %v648
  %v650 = vand.u32 %v59, 4294901760
  %v651 = vsub.f32 %v59, %v650
  %652 = vmatpush.msra.mxu0 %v651
  %v653 = vand.u32 %v57, 4294901760
  %v654 = vsub.f32 %v57, %v653
  %655 = vmatpush.msra.mxu0 %v654
  %v656 = vand.u32 %v23, 4294901760
  %v657 = vsub.f32 %v23, %v656
  %658 = vmatmul.f32.gmra.mxu0 %v657
  %v659 = vpop.f32.mrf.mxu0
  %v660 = vadd.f32 %v606, %v659
  %661 = vdwg.mxu0
  %v662 = vand.u32 %v87, 4294901760
  %663 = vmatpush.msra.mxu0 %v662
  %v664 = vand.u32 %v85, 4294901760
  %665 = vmatpush.msra.mxu0 %v664
  %v666 = vand.u32 %v83, 4294901760
  %667 = vmatpush.msra.mxu0 %v666
  %v668 = vand.u32 %v81, 4294901760
  %669 = vmatpush.msra.mxu0 %v668
  %v670 = vand.u32 %v79, 4294901760
  %671 = vmatpush.msra.mxu0 %v670
  %v672 = vand.u32 %v77, 4294901760
  %673 = vmatpush.msra.mxu0 %v672
  %v674 = vand.u32 %v75, 4294901760
  %675 = vmatpush.msra.mxu0 %v674
  %v676 = vand.u32 %v73, 4294901760
  %677 = vmatpush.msra.mxu0 %v676
  %v678 = vand.u32 %v71, 4294901760
  %679 = vmatpush.msra.mxu0 %v678
  %v680 = vand.u32 %v69, 4294901760
  %681 = vmatpush.msra.mxu0 %v680
  %v682 = vand.u32 %v67, 4294901760
  %683 = vmatpush.msra.mxu0 %v682
  %v684 = vand.u32 %v65, 4294901760
  %685 = vmatpush.msra.mxu0 %v684
  %v686 = vand.u32 %v63, 4294901760
  %687 = vmatpush.msra.mxu0 %v686
  %v688 = vand.u32 %v61, 4294901760
  %689 = vmatpush.msra.mxu0 %v688
  %v690 = vand.u32 %v59, 4294901760
  %691 = vmatpush.msra.mxu0 %v690
  %v692 = vand.u32 %v57, 4294901760
  %693 = vmatpush.msra.mxu0 %v692
  %v694 = vand.u32 %v23, 4294901760
  %v695 = vsub.f32 %v23, %v694
  %v696 = vand.u32 %v695, 4294901760
  %697 = vmatmul.f32.gmra.mxu0 %v696
  %v698 = vpop.f32.mrf.mxu0
  %v699 = vadd.f32 %v660, %v698
  %700 = vdwg.mxu0
  %v701 = vand.u32 %v87, 4294901760
  %v702 = vsub.f32 %v87, %v701
  %v703 = vand.u32 %v702, 4294901760
  %704 = vmatpush.msra.mxu0 %v703
  %v705 = vand.u32 %v85, 4294901760
  %v706 = vsub.f32 %v85, %v705
  %v707 = vand.u32 %v706, 4294901760
  %708 = vmatpush.msra.mxu0 %v707
  %v709 = vand.u32 %v83, 4294901760
  %v710 = vsub.f32 %v83, %v709
  %v711 = vand.u32 %v710, 4294901760
  %712 = vmatpush.msra.mxu0 %v711
  %v713 = vand.u32 %v81, 4294901760
  %v714 = vsub.f32 %v81, %v713
  %v715 = vand.u32 %v714, 4294901760
  %716 = vmatpush.msra.mxu0 %v715
  %v717 = vand.u32 %v79, 4294901760
  %v718 = vsub.f32 %v79, %v717
  %v719 = vand.u32 %v718, 4294901760
  %720 = vmatpush.msra.mxu0 %v719
  %v721 = vand.u32 %v77, 4294901760
  %v722 = vsub.f32 %v77, %v721
  %v723 = vand.u32 %v722, 4294901760
  %724 = vmatpush.msra.mxu0 %v723
  %v725 = vand.u32 %v75, 4294901760
  %v726 = vsub.f32 %v75, %v725
  %v727 = vand.u32 %v726, 4294901760
  %728 = vmatpush.msra.mxu0 %v727
  %v729 = vand.u32 %v73, 4294901760
  %v730 = vsub.f32 %v73, %v729
  %v731 = vand.u32 %v730, 4294901760
  %732 = vmatpush.msra.mxu0 %v731
  %v733 = vand.u32 %v71, 4294901760
  %v734 = vsub.f32 %v71, %v733
  %v735 = vand.u32 %v734, 4294901760
  %736 = vmatpush.msra.mxu0 %v735
  %v737 = vand.u32 %v69, 4294901760
  %v738 = vsub.f32 %v69, %v737
  %v739 = vand.u32 %v738, 4294901760
  %740 = vmatpush.msra.mxu0 %v739
  %v741 = vand.u32 %v67, 4294901760
  %v742 = vsub.f32 %v67, %v741
  %v743 = vand.u32 %v742, 4294901760
  %744 = vmatpush.msra.mxu0 %v743
  %v745 = vand.u32 %v65, 4294901760
  %v746 = vsub.f32 %v65, %v745
  %v747 = vand.u32 %v746, 4294901760
  %748 = vmatpush.msra.mxu0 %v747
  %v749 = vand.u32 %v63, 4294901760
  %v750 = vsub.f32 %v63, %v749
  %v751 = vand.u32 %v750, 4294901760
  %752 = vmatpush.msra.mxu0 %v751
  %v753 = vand.u32 %v61, 4294901760
  %v754 = vsub.f32 %v61, %v753
  %v755 = vand.u32 %v754, 4294901760
  %756 = vmatpush.msra.mxu0 %v755
  %v757 = vand.u32 %v59, 4294901760
  %v758 = vsub.f32 %v59, %v757
  %v759 = vand.u32 %v758, 4294901760
  %760 = vmatpush.msra.mxu0 %v759
  %v761 = vand.u32 %v57, 4294901760
  %v762 = vsub.f32 %v57, %v761
  %v763 = vand.u32 %v762, 4294901760
  %764 = vmatpush.msra.mxu0 %v763
  %v765 = vand.u32 %v23, 4294901760
  %766 = vmatmul.f32.gmra.mxu0 %v765
  %v767 = vpop.f32.mrf.mxu0
  %v768 = vadd.f32 %v699, %v767
  %769 = vdwg.mxu0
  %v770 = vand.u32 %v87, 4294901760
  %771 = vmatpush.msra.mxu0 %v770
  %v772 = vand.u32 %v85, 4294901760
  %773 = vmatpush.msra.mxu0 %v772
  %v774 = vand.u32 %v83, 4294901760
  %775 = vmatpush.msra.mxu0 %v774
  %v776 = vand.u32 %v81, 4294901760
  %777 = vmatpush.msra.mxu0 %v776
  %v778 = vand.u32 %v79, 4294901760
  %779 = vmatpush.msra.mxu0 %v778
  %v780 = vand.u32 %v77, 4294901760
  %781 = vmatpush.msra.mxu0 %v780
  %v782 = vand.u32 %v75, 4294901760
  %783 = vmatpush.msra.mxu0 %v782
  %v784 = vand.u32 %v73, 4294901760
  %785 = vmatpush.msra.mxu0 %v784
  %v786 = vand.u32 %v71, 4294901760
  %787 = vmatpush.msra.mxu0 %v786
  %v788 = vand.u32 %v69, 4294901760
  %789 = vmatpush.msra.mxu0 %v788
  %v790 = vand.u32 %v67, 4294901760
  %791 = vmatpush.msra.mxu0 %v790
  %v792 = vand.u32 %v65, 4294901760
  %793 = vmatpush.msra.mxu0 %v792
  %v794 = vand.u32 %v63, 4294901760
  %795 = vmatpush.msra.mxu0 %v794
  %v796 = vand.u32 %v61, 4294901760
  %797 = vmatpush.msra.mxu0 %v796
  %v798 = vand.u32 %v59, 4294901760
  %799 = vmatpush.msra.mxu0 %v798
  %v800 = vand.u32 %v57, 4294901760
  %801 = vmatpush.msra.mxu0 %v800
  %v802 = vand.u32 %v23, 4294901760
  %803 = vmatmul.f32.gmra.mxu0 %v802
  %v804 = vpop.f32.mrf.mxu0
  %v805 = vadd.f32 %v768, %v804
  %806 = vdwg.mxu0
  %807 = vmatpush.msra.mxu0 0.0
  %808 = vmatpush.msra.mxu0 0.0
  %809 = vmatpush.msra.mxu0 0.0
  %v810 = vand.u32 %v113, 4294901760
  %811 = vmatpush.msra.mxu0 %v810
  %v812 = vand.u32 %v111, 4294901760
  %813 = vmatpush.msra.mxu0 %v812
  %v814 = vand.u32 %v109, 4294901760
  %815 = vmatpush.msra.mxu0 %v814
  %v816 = vand.u32 %v107, 4294901760
  %817 = vmatpush.msra.mxu0 %v816
  %v818 = vand.u32 %v105, 4294901760
  %819 = vmatpush.msra.mxu0 %v818
  %v820 = vand.u32 %v103, 4294901760
  %821 = vmatpush.msra.mxu0 %v820
  %v822 = vand.u32 %v101, 4294901760
  %823 = vmatpush.msra.mxu0 %v822
  %v824 = vand.u32 %v99, 4294901760
  %825 = vmatpush.msra.mxu0 %v824
  %v826 = vand.u32 %v97, 4294901760
  %827 = vmatpush.msra.mxu0 %v826
  %v828 = vand.u32 %v95, 4294901760
  %829 = vmatpush.msra.mxu0 %v828
  %v830 = vand.u32 %v93, 4294901760
  %831 = vmatpush.msra.mxu0 %v830
  %v832 = vand.u32 %v91, 4294901760
  %833 = vmatpush.msra.mxu0 %v832
  %v834 = vand.u32 %v89, 4294901760
  %835 = vmatpush.msra.mxu0 %v834
  %v836 = vand.u32 %v123, 4294901760
  %v837 = vsub.f32 %v123, %v836
  %v838 = vand.u32 %v837, 4294901760
  %v839 = vsub.f32 %v837, %v838
  %v840 = vand.u32 %v839, 4294901760
  %841 = vmatmul.f32.gmra.mxu0 %v840
  %v842 = vpop.f32.mrf.mxu0
  %v843 = vadd.f32 %v805, %v842
  %844 = vdwg.mxu0
  %845 = vmatpush.msra.mxu0 0.0
  %846 = vmatpush.msra.mxu0 0.0
  %847 = vmatpush.msra.mxu0 0.0
  %v848 = vand.u32 %v113, 4294901760
  %v849 = vsub.f32 %v113, %v848
  %v850 = vand.u32 %v849, 4294901760
  %v851 = vsub.f32 %v849, %v850
  %v852 = vand.u32 %v851, 4294901760
  %853 = vmatpush.msra.mxu0 %v852
  %v854 = vand.u32 %v111, 4294901760
  %v855 = vsub.f32 %v111, %v854
  %v856 = vand.u32 %v855, 4294901760
  %v857 = vsub.f32 %v855, %v856
  %v858 = vand.u32 %v857, 4294901760
  %859 = vmatpush.msra.mxu0 %v858
  %v860 = vand.u32 %v109, 4294901760
  %v861 = vsub.f32 %v109, %v860
  %v862 = vand.u32 %v861, 4294901760
  %v863 = vsub.f32 %v861, %v862
  %v864 = vand.u32 %v863, 4294901760
  %865 = vmatpush.msra.mxu0 %v864
  %v866 = vand.u32 %v107, 4294901760
  %v867 = vsub.f32 %v107, %v866
  %v868 = vand.u32 %v867, 4294901760
  %v869 = vsub.f32 %v867, %v868
  %v870 = vand.u32 %v869, 4294901760
  %871 = vmatpush.msra.mxu0 %v870
  %v872 = vand.u32 %v105, 4294901760
  %v873 = vsub.f32 %v105, %v872
  %v874 = vand.u32 %v873, 4294901760
  %v875 = vsub.f32 %v873, %v874
  %v876 = vand.u32 %v875, 4294901760
  %877 = vmatpush.msra.mxu0 %v876
  %v878 = vand.u32 %v103, 4294901760
  %v879 = vsub.f32 %v103, %v878
  %v880 = vand.u32 %v879, 4294901760
  %v881 = vsub.f32 %v879, %v880
  %v882 = vand.u32 %v881, 4294901760
  %883 = vmatpush.msra.mxu0 %v882
  %v884 = vand.u32 %v101, 4294901760
  %v885 = vsub.f32 %v101, %v884
  %v886 = vand.u32 %v885, 4294901760
  %v887 = vsub.f32 %v885, %v886
  %v888 = vand.u32 %v887, 4294901760
  %889 = vmatpush.msra.mxu0 %v888
  %v890 = vand.u32 %v99, 4294901760
  %v891 = vsub.f32 %v99, %v890
  %v892 = vand.u32 %v891, 4294901760
  %v893 = vsub.f32 %v891, %v892
  %v894 = vand.u32 %v893, 4294901760
  %895 = vmatpush.msra.mxu0 %v894
  %v896 = vand.u32 %v97, 4294901760
  %v897 = vsub.f32 %v97, %v896
  %v898 = vand.u32 %v897, 4294901760
  %v899 = vsub.f32 %v897, %v898
  %v900 = vand.u32 %v899, 4294901760
  %901 = vmatpush.msra.mxu0 %v900
  %v902 = vand.u32 %v95, 4294901760
  %v903 = vsub.f32 %v95, %v902
  %v904 = vand.u32 %v903, 4294901760
  %v905 = vsub.f32 %v903, %v904
  %v906 = vand.u32 %v905, 4294901760
  %907 = vmatpush.msra.mxu0 %v906
  %v908 = vand.u32 %v93, 4294901760
  %v909 = vsub.f32 %v93, %v908
  %v910 = vand.u32 %v909, 4294901760
  %v911 = vsub.f32 %v909, %v910
  %v912 = vand.u32 %v911, 4294901760
  %913 = vmatpush.msra.mxu0 %v912
  %v914 = vand.u32 %v91, 4294901760
  %v915 = vsub.f32 %v91, %v914
  %v916 = vand.u32 %v915, 4294901760
  %v917 = vsub.f32 %v915, %v916
  %v918 = vand.u32 %v917, 4294901760
  %919 = vmatpush.msra.mxu0 %v918
  %v920 = vand.u32 %v89, 4294901760
  %v921 = vsub.f32 %v89, %v920
  %v922 = vand.u32 %v921, 4294901760
  %v923 = vsub.f32 %v921, %v922
  %v924 = vand.u32 %v923, 4294901760
  %925 = vmatpush.msra.mxu0 %v924
  %v926 = vand.u32 %v123, 4294901760
  %927 = vmatmul.f32.gmra.mxu0 %v926
  %v928 = vpop.f32.mrf.mxu0
  %v929 = vadd.f32 %v843, %v928
  %930 = vdwg.mxu0
  %931 = vmatpush.msra.mxu0 0.0
  %932 = vmatpush.msra.mxu0 0.0
  %933 = vmatpush.msra.mxu0 0.0
  %v934 = vand.u32 %v113, 4294901760
  %v935 = vsub.f32 %v113, %v934
  %936 = vmatpush.msra.mxu0 %v935
  %v937 = vand.u32 %v111, 4294901760
  %v938 = vsub.f32 %v111, %v937
  %939 = vmatpush.msra.mxu0 %v938
  %v940 = vand.u32 %v109, 4294901760
  %v941 = vsub.f32 %v109, %v940
  %942 = vmatpush.msra.mxu0 %v941
  %v943 = vand.u32 %v107, 4294901760
  %v944 = vsub.f32 %v107, %v943
  %945 = vmatpush.msra.mxu0 %v944
  %v946 = vand.u32 %v105, 4294901760
  %v947 = vsub.f32 %v105, %v946
  %948 = vmatpush.msra.mxu0 %v947
  %v949 = vand.u32 %v103, 4294901760
  %v950 = vsub.f32 %v103, %v949
  %951 = vmatpush.msra.mxu0 %v950
  %v952 = vand.u32 %v101, 4294901760
  %v953 = vsub.f32 %v101, %v952
  %954 = vmatpush.msra.mxu0 %v953
  %v955 = vand.u32 %v99, 4294901760
  %v956 = vsub.f32 %v99, %v955
  %957 = vmatpush.msra.mxu0 %v956
  %v958 = vand.u32 %v97, 4294901760
  %v959 = vsub.f32 %v97, %v958
  %960 = vmatpush.msra.mxu0 %v959
  %v961 = vand.u32 %v95, 4294901760
  %v962 = vsub.f32 %v95, %v961
  %963 = vmatpush.msra.mxu0 %v962
  %v964 = vand.u32 %v93, 4294901760
  %v965 = vsub.f32 %v93, %v964
  %966 = vmatpush.msra.mxu0 %v965
  %v967 = vand.u32 %v91, 4294901760
  %v968 = vsub.f32 %v91, %v967
  %969 = vmatpush.msra.mxu0 %v968
  %v970 = vand.u32 %v89, 4294901760
  %v971 = vsub.f32 %v89, %v970
  %972 = vmatpush.msra.mxu0 %v971
  %v973 = vand.u32 %v123, 4294901760
  %v974 = vsub.f32 %v123, %v973
  %975 = vmatmul.f32.gmra.mxu0 %v974
  %v976 = vpop.f32.mrf.mxu0
  %v977 = vadd.f32 %v929, %v976
  %978 = vdwg.mxu0
  %979 = vmatpush.msra.mxu0 0.0
  %980 = vmatpush.msra.mxu0 0.0
  %981 = vmatpush.msra.mxu0 0.0
  %v982 = vand.u32 %v113, 4294901760
  %983 = vmatpush.msra.mxu0 %v982
  %v984 = vand.u32 %v111, 4294901760
  %985 = vmatpush.msra.mxu0 %v984
  %v986 = vand.u32 %v109, 4294901760
  %987 = vmatpush.msra.mxu0 %v986
  %v988 = vand.u32 %v107, 4294901760
  %989 = vmatpush.msra.mxu0 %v988
  %v990 = vand.u32 %v105, 4294901760
  %991 = vmatpush.msra.mxu0 %v990
  %v992 = vand.u32 %v103, 4294901760
  %993 = vmatpush.msra.mxu0 %v992
  %v994 = vand.u32 %v101, 4294901760
  %995 = vmatpush.msra.mxu0 %v994
  %v996 = vand.u32 %v99, 4294901760
  %997 = vmatpush.msra.mxu0 %v996
  %v998 = vand.u32 %v97, 4294901760
  %999 = vmatpush.msra.mxu0 %v998
  %v1000 = vand.u32 %v95, 4294901760
  %1001 = vmatpush.msra.mxu0 %v1000
  %v1002 = vand.u32 %v93, 4294901760
  %1003 = vmatpush.msra.mxu0 %v1002
  %v1004 = vand.u32 %v91, 4294901760
  %1005 = vmatpush.msra.mxu0 %v1004
  %v1006 = vand.u32 %v89, 4294901760
  %1007 = vmatpush.msra.mxu0 %v1006
  %v1008 = vand.u32 %v123, 4294901760
  %v1009 = vsub.f32 %v123, %v1008
  %v1010 = vand.u32 %v1009, 4294901760
  %1011 = vmatmul.f32.gmra.mxu0 %v1010
  %v1012 = vpop.f32.mrf.mxu0
  %v1013 = vadd.f32 %v977, %v1012
  %1014 = vdwg.mxu0
  %1015 = vmatpush.msra.mxu0 0.0
  %1016 = vmatpush.msra.mxu0 0.0
  %1017 = vmatpush.msra.mxu0 0.0
  %v1018 = vand.u32 %v113, 4294901760
  %v1019 = vsub.f32 %v113, %v1018
  %v1020 = vand.u32 %v1019, 4294901760
  %1021 = vmatpush.msra.mxu0 %v1020
  %v1022 = vand.u32 %v111, 4294901760
  %v1023 = vsub.f32 %v111, %v1022
  %v1024 = vand.u32 %v1023, 4294901760
  %1025 = vmatpush.msra.mxu0 %v1024
  %v1026 = vand.u32 %v109, 4294901760
  %v1027 = vsub.f32 %v109, %v1026
  %v1028 = vand.u32 %v1027, 4294901760
  %1029 = vmatpush.msra.mxu0 %v1028
  %v1030 = vand.u32 %v107, 4294901760
  %v1031 = vsub.f32 %v107, %v1030
  %v1032 = vand.u32 %v1031, 4294901760
  %1033 = vmatpush.msra.mxu0 %v1032
  %v1034 = vand.u32 %v105, 4294901760
  %v1035 = vsub.f32 %v105, %v1034
  %v1036 = vand.u32 %v1035, 4294901760
  %1037 = vmatpush.msra.mxu0 %v1036
  %v1038 = vand.u32 %v103, 4294901760
  %v1039 = vsub.f32 %v103, %v1038
  %v1040 = vand.u32 %v1039, 4294901760
  %1041 = vmatpush.msra.mxu0 %v1040
  %v1042 = vand.u32 %v101, 4294901760
  %v1043 = vsub.f32 %v101, %v1042
  %v1044 = vand.u32 %v1043, 4294901760
  %1045 = vmatpush.msra.mxu0 %v1044
  %v1046 = vand.u32 %v99, 4294901760
  %v1047 = vsub.f32 %v99, %v1046
  %v1048 = vand.u32 %v1047, 4294901760
  %1049 = vmatpush.msra.mxu0 %v1048
  %v1050 = vand.u32 %v97, 4294901760
  %v1051 = vsub.f32 %v97, %v1050
  %v1052 = vand.u32 %v1051, 4294901760
  %1053 = vmatpush.msra.mxu0 %v1052
  %v1054 = vand.u32 %v95, 4294901760
  %v1055 = vsub.f32 %v95, %v1054
  %v1056 = vand.u32 %v1055, 4294901760
  %1057 = vmatpush.msra.mxu0 %v1056
  %v1058 = vand.u32 %v93, 4294901760
  %v1059 = vsub.f32 %v93, %v1058
  %v1060 = vand.u32 %v1059, 4294901760
  %1061 = vmatpush.msra.mxu0 %v1060
  %v1062 = vand.u32 %v91, 4294901760
  %v1063 = vsub.f32 %v91, %v1062
  %v1064 = vand.u32 %v1063, 4294901760
  %1065 = vmatpush.msra.mxu0 %v1064
  %v1066 = vand.u32 %v89, 4294901760
  %v1067 = vsub.f32 %v89, %v1066
  %v1068 = vand.u32 %v1067, 4294901760
  %1069 = vmatpush.msra.mxu0 %v1068
  %v1070 = vand.u32 %v123, 4294901760
  %1071 = vmatmul.f32.gmra.mxu0 %v1070
  %v1072 = vpop.f32.mrf.mxu0
  %v1073 = vadd.f32 %v1013, %v1072
  %1074 = vdwg.mxu0
  %1075 = vmatpush.msra.mxu0 0.0
  %1076 = vmatpush.msra.mxu0 0.0
  %1077 = vmatpush.msra.mxu0 0.0
  %v1078 = vand.u32 %v113, 4294901760
  %1079 = vmatpush.msra.mxu0 %v1078
  %v1080 = vand.u32 %v111, 4294901760
  %1081 = vmatpush.msra.mxu0 %v1080
  %v1082 = vand.u32 %v109, 4294901760
  %1083 = vmatpush.msra.mxu0 %v1082
  %v1084 = vand.u32 %v107, 4294901760
  %1085 = vmatpush.msra.mxu0 %v1084
  %v1086 = vand.u32 %v105, 4294901760
  %1087 = vmatpush.msra.mxu0 %v1086
  %v1088 = vand.u32 %v103, 4294901760
  %1089 = vmatpush.msra.mxu0 %v1088
  %v1090 = vand.u32 %v101, 4294901760
  %1091 = vmatpush.msra.mxu0 %v1090
  %v1092 = vand.u32 %v99, 4294901760
  %1093 = vmatpush.msra.mxu0 %v1092
  %v1094 = vand.u32 %v97, 4294901760
  %1095 = vmatpush.msra.mxu0 %v1094
  %v1096 = vand.u32 %v95, 4294901760
  %1097 = vmatpush.msra.mxu0 %v1096
  %v1098 = vand.u32 %v93, 4294901760
  %1099 = vmatpush.msra.mxu0 %v1098
  %v1100 = vand.u32 %v91, 4294901760
  %1101 = vmatpush.msra.mxu0 %v1100
  %v1102 = vand.u32 %v89, 4294901760
  %1103 = vmatpush.msra.mxu0 %v1102
  %v1104 = vand.u32 %v123, 4294901760
  %1105 = vmatmul.f32.gmra.mxu0 %v1104
  %v1106 = vpop.f32.mrf.mxu0
  %v1107 = vadd.f32 %v1073, %v1106
  %1108 = vdwg.mxu0
  %v1109 = vand.u32 %v56, 4294901760
  %1110 = vmatpush.msra.mxu0 %v1109
  %v1111 = vand.u32 %v54, 4294901760
  %1112 = vmatpush.msra.mxu0 %v1111
  %v1113 = vand.u32 %v52, 4294901760
  %1114 = vmatpush.msra.mxu0 %v1113
  %v1115 = vand.u32 %v50, 4294901760
  %1116 = vmatpush.msra.mxu0 %v1115
  %v1117 = vand.u32 %v48, 4294901760
  %1118 = vmatpush.msra.mxu0 %v1117
  %v1119 = vand.u32 %v46, 4294901760
  %1120 = vmatpush.msra.mxu0 %v1119
  %v1121 = vand.u32 %v44, 4294901760
  %1122 = vmatpush.msra.mxu0 %v1121
  %v1123 = vand.u32 %v42, 4294901760
  %1124 = vmatpush.msra.mxu0 %v1123
  %v1125 = vand.u32 %v40, 4294901760
  %1126 = vmatpush.msra.mxu0 %v1125
  %v1127 = vand.u32 %v38, 4294901760
  %1128 = vmatpush.msra.mxu0 %v1127
  %v1129 = vand.u32 %v36, 4294901760
  %1130 = vmatpush.msra.mxu0 %v1129
  %v1131 = vand.u32 %v34, 4294901760
  %1132 = vmatpush.msra.mxu0 %v1131
  %v1133 = vand.u32 %v32, 4294901760
  %1134 = vmatpush.msra.mxu0 %v1133
  %v1135 = vand.u32 %v30, 4294901760
  %1136 = vmatpush.msra.mxu0 %v1135
  %v1137 = vand.u32 %v28, 4294901760
  %1138 = vmatpush.msra.mxu0 %v1137
  %v1139 = vand.u32 %v26, 4294901760
  %1140 = vmatpush.msra.mxu0 %v1139
  %v1141 = vand.u32 %v22, 4294901760
  %v1142 = vsub.f32 %v22, %v1141
  %v1143 = vand.u32 %v1142, 4294901760
  %v1144 = vsub.f32 %v1142, %v1143
  %v1145 = vand.u32 %v1144, 4294901760
  %1146 = vmatmul.f32.gmra.mxu0 %v1145
  %v1147 = vpop.f32.mrf.mxu0
  %v1148 = vadd.f32 %v118, %v1147
  %1149 = vdwg.mxu0
  %v1150 = vand.u32 %v56, 4294901760
  %v1151 = vsub.f32 %v56, %v1150
  %v1152 = vand.u32 %v1151, 4294901760
  %v1153 = vsub.f32 %v1151, %v1152
  %v1154 = vand.u32 %v1153, 4294901760
  %1155 = vmatpush.msra.mxu0 %v1154
  %v1156 = vand.u32 %v54, 4294901760
  %v1157 = vsub.f32 %v54, %v1156
  %v1158 = vand.u32 %v1157, 4294901760
  %v1159 = vsub.f32 %v1157, %v1158
  %v1160 = vand.u32 %v1159, 4294901760
  %1161 = vmatpush.msra.mxu0 %v1160
  %v1162 = vand.u32 %v52, 4294901760
  %v1163 = vsub.f32 %v52, %v1162
  %v1164 = vand.u32 %v1163, 4294901760
  %v1165 = vsub.f32 %v1163, %v1164
  %v1166 = vand.u32 %v1165, 4294901760
  %1167 = vmatpush.msra.mxu0 %v1166
  %v1168 = vand.u32 %v50, 4294901760
  %v1169 = vsub.f32 %v50, %v1168
  %v1170 = vand.u32 %v1169, 4294901760
  %v1171 = vsub.f32 %v1169, %v1170
  %v1172 = vand.u32 %v1171, 4294901760
  %1173 = vmatpush.msra.mxu0 %v1172
  %v1174 = vand.u32 %v48, 4294901760
  %v1175 = vsub.f32 %v48, %v1174
  %v1176 = vand.u32 %v1175, 4294901760
  %v1177 = vsub.f32 %v1175, %v1176
  %v1178 = vand.u32 %v1177, 4294901760
  %1179 = vmatpush.msra.mxu0 %v1178
  %v1180 = vand.u32 %v46, 4294901760
  %v1181 = vsub.f32 %v46, %v1180
  %v1182 = vand.u32 %v1181, 4294901760
  %v1183 = vsub.f32 %v1181, %v1182
  %v1184 = vand.u32 %v1183, 4294901760
  %1185 = vmatpush.msra.mxu0 %v1184
  %v1186 = vand.u32 %v44, 4294901760
  %v1187 = vsub.f32 %v44, %v1186
  %v1188 = vand.u32 %v1187, 4294901760
  %v1189 = vsub.f32 %v1187, %v1188
  %v1190 = vand.u32 %v1189, 4294901760
  %1191 = vmatpush.msra.mxu0 %v1190
  %v1192 = vand.u32 %v42, 4294901760
  %v1193 = vsub.f32 %v42, %v1192
  %v1194 = vand.u32 %v1193, 4294901760
  %v1195 = vsub.f32 %v1193, %v1194
  %v1196 = vand.u32 %v1195, 4294901760
  %1197 = vmatpush.msra.mxu0 %v1196
  %v1198 = vand.u32 %v40, 4294901760
  %v1199 = vsub.f32 %v40, %v1198
  %v1200 = vand.u32 %v1199, 4294901760
  %v1201 = vsub.f32 %v1199, %v1200
  %v1202 = vand.u32 %v1201, 4294901760
  %1203 = vmatpush.msra.mxu0 %v1202
  %v1204 = vand.u32 %v38, 4294901760
  %v1205 = vsub.f32 %v38, %v1204
  %v1206 = vand.u32 %v1205, 4294901760
  %v1207 = vsub.f32 %v1205, %v1206
  %v1208 = vand.u32 %v1207, 4294901760
  %1209 = vmatpush.msra.mxu0 %v1208
  %v1210 = vand.u32 %v36, 4294901760
  %v1211 = vsub.f32 %v36, %v1210
  %v1212 = vand.u32 %v1211, 4294901760
  %v1213 = vsub.f32 %v1211, %v1212
  %v1214 = vand.u32 %v1213, 4294901760
  %1215 = vmatpush.msra.mxu0 %v1214
  %v1216 = vand.u32 %v34, 4294901760
  %v1217 = vsub.f32 %v34, %v1216
  %v1218 = vand.u32 %v1217, 4294901760
  %v1219 = vsub.f32 %v1217, %v1218
  %v1220 = vand.u32 %v1219, 4294901760
  %1221 = vmatpush.msra.mxu0 %v1220
  %v1222 = vand.u32 %v32, 4294901760
  %v1223 = vsub.f32 %v32, %v1222
  %v1224 = vand.u32 %v1223, 4294901760
  %v1225 = vsub.f32 %v1223, %v1224
  %v1226 = vand.u32 %v1225, 4294901760
  %1227 = vmatpush.msra.mxu0 %v1226
  %v1228 = vand.u32 %v30, 4294901760
  %v1229 = vsub.f32 %v30, %v1228
  %v1230 = vand.u32 %v1229, 4294901760
  %v1231 = vsub.f32 %v1229, %v1230
  %v1232 = vand.u32 %v1231, 4294901760
  %1233 = vmatpush.msra.mxu0 %v1232
  %v1234 = vand.u32 %v28, 4294901760
  %v1235 = vsub.f32 %v28, %v1234
  %v1236 = vand.u32 %v1235, 4294901760
  %v1237 = vsub.f32 %v1235, %v1236
  %v1238 = vand.u32 %v1237, 4294901760
  %1239 = vmatpush.msra.mxu0 %v1238
  %v1240 = vand.u32 %v26, 4294901760
  %v1241 = vsub.f32 %v26, %v1240
  %v1242 = vand.u32 %v1241, 4294901760
  %v1243 = vsub.f32 %v1241, %v1242
  %v1244 = vand.u32 %v1243, 4294901760
  %1245 = vmatpush.msra.mxu0 %v1244
  %v1246 = vand.u32 %v22, 4294901760
  %1247 = vmatmul.f32.gmra.mxu0 %v1246
  %v1248 = vpop.f32.mrf.mxu0
  %v1249 = vadd.f32 %v1148, %v1248
  %1250 = vdwg.mxu0
  %v1251 = vand.u32 %v56, 4294901760
  %v1252 = vsub.f32 %v56, %v1251
  %1253 = vmatpush.msra.mxu0 %v1252
  %v1254 = vand.u32 %v54, 4294901760
  %v1255 = vsub.f32 %v54, %v1254
  %1256 = vmatpush.msra.mxu0 %v1255
  %v1257 = vand.u32 %v52, 4294901760
  %v1258 = vsub.f32 %v52, %v1257
  %1259 = vmatpush.msra.mxu0 %v1258
  %v1260 = vand.u32 %v50, 4294901760
  %v1261 = vsub.f32 %v50, %v1260
  %1262 = vmatpush.msra.mxu0 %v1261
  %v1263 = vand.u32 %v48, 4294901760
  %v1264 = vsub.f32 %v48, %v1263
  %1265 = vmatpush.msra.mxu0 %v1264
  %v1266 = vand.u32 %v46, 4294901760
  %v1267 = vsub.f32 %v46, %v1266
  %1268 = vmatpush.msra.mxu0 %v1267
  %v1269 = vand.u32 %v44, 4294901760
  %v1270 = vsub.f32 %v44, %v1269
  %1271 = vmatpush.msra.mxu0 %v1270
  %v1272 = vand.u32 %v42, 4294901760
  %v1273 = vsub.f32 %v42, %v1272
  %1274 = vmatpush.msra.mxu0 %v1273
  %v1275 = vand.u32 %v40, 4294901760
  %v1276 = vsub.f32 %v40, %v1275
  %1277 = vmatpush.msra.mxu0 %v1276
  %v1278 = vand.u32 %v38, 4294901760
  %v1279 = vsub.f32 %v38, %v1278
  %1280 = vmatpush.msra.mxu0 %v1279
  %v1281 = vand.u32 %v36, 4294901760
  %v1282 = vsub.f32 %v36, %v1281
  %1283 = vmatpush.msra.mxu0 %v1282
  %v1284 = vand.u32 %v34, 4294901760
  %v1285 = vsub.f32 %v34, %v1284
  %1286 = vmatpush.msra.mxu0 %v1285
  %v1287 = vand.u32 %v32, 4294901760
  %v1288 = vsub.f32 %v32, %v1287
  %1289 = vmatpush.msra.mxu0 %v1288
  %v1290 = vand.u32 %v30, 4294901760
  %v1291 = vsub.f32 %v30, %v1290
  %1292 = vmatpush.msra.mxu0 %v1291
  %v1293 = vand.u32 %v28, 4294901760
  %v1294 = vsub.f32 %v28, %v1293
  %1295 = vmatpush.msra.mxu0 %v1294
  %v1296 = vand.u32 %v26, 4294901760
  %v1297 = vsub.f32 %v26, %v1296
  %1298 = vmatpush.msra.mxu0 %v1297
  %v1299 = vand.u32 %v22, 4294901760
  %v1300 = vsub.f32 %v22, %v1299
  %1301 = vmatmul.f32.gmra.mxu0 %v1300
  %v1302 = vpop.f32.mrf.mxu0
  %v1303 = vadd.f32 %v1249, %v1302
  %1304 = vdwg.mxu0
  %v1305 = vand.u32 %v56, 4294901760
  %1306 = vmatpush.msra.mxu0 %v1305
  %v1307 = vand.u32 %v54, 4294901760
  %1308 = vmatpush.msra.mxu0 %v1307
  %v1309 = vand.u32 %v52, 4294901760
  %1310 = vmatpush.msra.mxu0 %v1309
  %v1311 = vand.u32 %v50, 4294901760
  %1312 = vmatpush.msra.mxu0 %v1311
  %v1313 = vand.u32 %v48, 4294901760
  %1314 = vmatpush.msra.mxu0 %v1313
  %v1315 = vand.u32 %v46, 4294901760
  %1316 = vmatpush.msra.mxu0 %v1315
  %v1317 = vand.u32 %v44, 4294901760
  %1318 = vmatpush.msra.mxu0 %v1317
  %v1319 = vand.u32 %v42, 4294901760
  %1320 = vmatpush.msra.mxu0 %v1319
  %v1321 = vand.u32 %v40, 4294901760
  %1322 = vmatpush.msra.mxu0 %v1321
  %v1323 = vand.u32 %v38, 4294901760
  %1324 = vmatpush.msra.mxu0 %v1323
  %v1325 = vand.u32 %v36, 4294901760
  %1326 = vmatpush.msra.mxu0 %v1325
  %v1327 = vand.u32 %v34, 4294901760
  %1328 = vmatpush.msra.mxu0 %v1327
  %v1329 = vand.u32 %v32, 4294901760
  %1330 = vmatpush.msra.mxu0 %v1329
  %v1331 = vand.u32 %v30, 4294901760
  %1332 = vmatpush.msra.mxu0 %v1331
  %v1333 = vand.u32 %v28, 4294901760
  %1334 = vmatpush.msra.mxu0 %v1333
  %v1335 = vand.u32 %v26, 4294901760
  %1336 = vmatpush.msra.mxu0 %v1335
  %v1337 = vand.u32 %v22, 4294901760
  %v1338 = vsub.f32 %v22, %v1337
  %v1339 = vand.u32 %v1338, 4294901760
  %1340 = vmatmul.f32.gmra.mxu0 %v1339
  %v1341 = vpop.f32.mrf.mxu0
  %v1342 = vadd.f32 %v1303, %v1341
  %1343 = vdwg.mxu0
  %v1344 = vand.u32 %v56, 4294901760
  %v1345 = vsub.f32 %v56, %v1344
  %v1346 = vand.u32 %v1345, 4294901760
  %1347 = vmatpush.msra.mxu0 %v1346
  %v1348 = vand.u32 %v54, 4294901760
  %v1349 = vsub.f32 %v54, %v1348
  %v1350 = vand.u32 %v1349, 4294901760
  %1351 = vmatpush.msra.mxu0 %v1350
  %v1352 = vand.u32 %v52, 4294901760
  %v1353 = vsub.f32 %v52, %v1352
  %v1354 = vand.u32 %v1353, 4294901760
  %1355 = vmatpush.msra.mxu0 %v1354
  %v1356 = vand.u32 %v50, 4294901760
  %v1357 = vsub.f32 %v50, %v1356
  %v1358 = vand.u32 %v1357, 4294901760
  %1359 = vmatpush.msra.mxu0 %v1358
  %v1360 = vand.u32 %v48, 4294901760
  %v1361 = vsub.f32 %v48, %v1360
  %v1362 = vand.u32 %v1361, 4294901760
  %1363 = vmatpush.msra.mxu0 %v1362
  %v1364 = vand.u32 %v46, 4294901760
  %v1365 = vsub.f32 %v46, %v1364
  %v1366 = vand.u32 %v1365, 4294901760
  %1367 = vmatpush.msra.mxu0 %v1366
  %v1368 = vand.u32 %v44, 4294901760
  %v1369 = vsub.f32 %v44, %v1368
  %v1370 = vand.u32 %v1369, 4294901760
  %1371 = vmatpush.msra.mxu0 %v1370
  %v1372 = vand.u32 %v42, 4294901760
  %v1373 = vsub.f32 %v42, %v1372
  %v1374 = vand.u32 %v1373, 4294901760
  %1375 = vmatpush.msra.mxu0 %v1374
  %v1376 = vand.u32 %v40, 4294901760
  %v1377 = vsub.f32 %v40, %v1376
  %v1378 = vand.u32 %v1377, 4294901760
  %1379 = vmatpush.msra.mxu0 %v1378
  %v1380 = vand.u32 %v38, 4294901760
  %v1381 = vsub.f32 %v38, %v1380
  %v1382 = vand.u32 %v1381, 4294901760
  %1383 = vmatpush.msra.mxu0 %v1382
  %v1384 = vand.u32 %v36, 4294901760
  %v1385 = vsub.f32 %v36, %v1384
  %v1386 = vand.u32 %v1385, 4294901760
  %1387 = vmatpush.msra.mxu0 %v1386
  %v1388 = vand.u32 %v34, 4294901760
  %v1389 = vsub.f32 %v34, %v1388
  %v1390 = vand.u32 %v1389, 4294901760
  %1391 = vmatpush.msra.mxu0 %v1390
  %v1392 = vand.u32 %v32, 4294901760
  %v1393 = vsub.f32 %v32, %v1392
  %v1394 = vand.u32 %v1393, 4294901760
  %1395 = vmatpush.msra.mxu0 %v1394
  %v1396 = vand.u32 %v30, 4294901760
  %v1397 = vsub.f32 %v30, %v1396
  %v1398 = vand.u32 %v1397, 4294901760
  %1399 = vmatpush.msra.mxu0 %v1398
  %v1400 = vand.u32 %v28, 4294901760
  %v1401 = vsub.f32 %v28, %v1400
  %v1402 = vand.u32 %v1401, 4294901760
  %1403 = vmatpush.msra.mxu0 %v1402
  %v1404 = vand.u32 %v26, 4294901760
  %v1405 = vsub.f32 %v26, %v1404
  %v1406 = vand.u32 %v1405, 4294901760
  %1407 = vmatpush.msra.mxu0 %v1406
  %v1408 = vand.u32 %v22, 4294901760
  %1409 = vmatmul.f32.gmra.mxu0 %v1408
  %v1410 = vpop.f32.mrf.mxu0
  %v1411 = vadd.f32 %v1342, %v1410
  %1412 = vdwg.mxu0
  %v1413 = vand.u32 %v56, 4294901760
  %1414 = vmatpush.msra.mxu0 %v1413
  %v1415 = vand.u32 %v54, 4294901760
  %1416 = vmatpush.msra.mxu0 %v1415
  %v1417 = vand.u32 %v52, 4294901760
  %1418 = vmatpush.msra.mxu0 %v1417
  %v1419 = vand.u32 %v50, 4294901760
  %1420 = vmatpush.msra.mxu0 %v1419
  %v1421 = vand.u32 %v48, 4294901760
  %1422 = vmatpush.msra.mxu0 %v1421
  %v1423 = vand.u32 %v46, 4294901760
  %1424 = vmatpush.msra.mxu0 %v1423
  %v1425 = vand.u32 %v44, 4294901760
  %1426 = vmatpush.msra.mxu0 %v1425
  %v1427 = vand.u32 %v42, 4294901760
  %1428 = vmatpush.msra.mxu0 %v1427
  %v1429 = vand.u32 %v40, 4294901760
  %1430 = vmatpush.msra.mxu0 %v1429
  %v1431 = vand.u32 %v38, 4294901760
  %1432 = vmatpush.msra.mxu0 %v1431
  %v1433 = vand.u32 %v36, 4294901760
  %1434 = vmatpush.msra.mxu0 %v1433
  %v1435 = vand.u32 %v34, 4294901760
  %1436 = vmatpush.msra.mxu0 %v1435
  %v1437 = vand.u32 %v32, 4294901760
  %1438 = vmatpush.msra.mxu0 %v1437
  %v1439 = vand.u32 %v30, 4294901760
  %1440 = vmatpush.msra.mxu0 %v1439
  %v1441 = vand.u32 %v28, 4294901760
  %1442 = vmatpush.msra.mxu0 %v1441
  %v1443 = vand.u32 %v26, 4294901760
  %1444 = vmatpush.msra.mxu0 %v1443
  %v1445 = vand.u32 %v22, 4294901760
  %1446 = vmatmul.f32.gmra.mxu0 %v1445
  %v1447 = vpop.f32.mrf.mxu0
  %v1448 = vadd.f32 %v1411, %v1447
  %1449 = vdwg.mxu0
  %v1450 = vand.u32 %v88, 4294901760
  %1451 = vmatpush.msra.mxu0 %v1450
  %v1452 = vand.u32 %v86, 4294901760
  %1453 = vmatpush.msra.mxu0 %v1452
  %v1454 = vand.u32 %v84, 4294901760
  %1455 = vmatpush.msra.mxu0 %v1454
  %v1456 = vand.u32 %v82, 4294901760
  %1457 = vmatpush.msra.mxu0 %v1456
  %v1458 = vand.u32 %v80, 4294901760
  %1459 = vmatpush.msra.mxu0 %v1458
  %v1460 = vand.u32 %v78, 4294901760
  %1461 = vmatpush.msra.mxu0 %v1460
  %v1462 = vand.u32 %v76, 4294901760
  %1463 = vmatpush.msra.mxu0 %v1462
  %v1464 = vand.u32 %v74, 4294901760
  %1465 = vmatpush.msra.mxu0 %v1464
  %v1466 = vand.u32 %v72, 4294901760
  %1467 = vmatpush.msra.mxu0 %v1466
  %v1468 = vand.u32 %v70, 4294901760
  %1469 = vmatpush.msra.mxu0 %v1468
  %v1470 = vand.u32 %v68, 4294901760
  %1471 = vmatpush.msra.mxu0 %v1470
  %v1472 = vand.u32 %v66, 4294901760
  %1473 = vmatpush.msra.mxu0 %v1472
  %v1474 = vand.u32 %v64, 4294901760
  %1475 = vmatpush.msra.mxu0 %v1474
  %v1476 = vand.u32 %v62, 4294901760
  %1477 = vmatpush.msra.mxu0 %v1476
  %v1478 = vand.u32 %v60, 4294901760
  %1479 = vmatpush.msra.mxu0 %v1478
  %v1480 = vand.u32 %v58, 4294901760
  %1481 = vmatpush.msra.mxu0 %v1480
  %v1482 = vand.u32 %v23, 4294901760
  %v1483 = vsub.f32 %v23, %v1482
  %v1484 = vand.u32 %v1483, 4294901760
  %v1485 = vsub.f32 %v1483, %v1484
  %v1486 = vand.u32 %v1485, 4294901760
  %1487 = vmatmul.f32.gmra.mxu0 %v1486
  %v1488 = vpop.f32.mrf.mxu0
  %v1489 = vadd.f32 %v1448, %v1488
  %1490 = vdwg.mxu0
  %v1491 = vand.u32 %v88, 4294901760
  %v1492 = vsub.f32 %v88, %v1491
  %v1493 = vand.u32 %v1492, 4294901760
  %v1494 = vsub.f32 %v1492, %v1493
  %v1495 = vand.u32 %v1494, 4294901760
  %1496 = vmatpush.msra.mxu0 %v1495
  %v1497 = vand.u32 %v86, 4294901760
  %v1498 = vsub.f32 %v86, %v1497
  %v1499 = vand.u32 %v1498, 4294901760
  %v1500 = vsub.f32 %v1498, %v1499
  %v1501 = vand.u32 %v1500, 4294901760
  %1502 = vmatpush.msra.mxu0 %v1501
  %v1503 = vand.u32 %v84, 4294901760
  %v1504 = vsub.f32 %v84, %v1503
  %v1505 = vand.u32 %v1504, 4294901760
  %v1506 = vsub.f32 %v1504, %v1505
  %v1507 = vand.u32 %v1506, 4294901760
  %1508 = vmatpush.msra.mxu0 %v1507
  %v1509 = vand.u32 %v82, 4294901760
  %v1510 = vsub.f32 %v82, %v1509
  %v1511 = vand.u32 %v1510, 4294901760
  %v1512 = vsub.f32 %v1510, %v1511
  %v1513 = vand.u32 %v1512, 4294901760
  %1514 = vmatpush.msra.mxu0 %v1513
  %v1515 = vand.u32 %v80, 4294901760
  %v1516 = vsub.f32 %v80, %v1515
  %v1517 = vand.u32 %v1516, 4294901760
  %v1518 = vsub.f32 %v1516, %v1517
  %v1519 = vand.u32 %v1518, 4294901760
  %1520 = vmatpush.msra.mxu0 %v1519
  %v1521 = vand.u32 %v78, 4294901760
  %v1522 = vsub.f32 %v78, %v1521
  %v1523 = vand.u32 %v1522, 4294901760
  %v1524 = vsub.f32 %v1522, %v1523
  %v1525 = vand.u32 %v1524, 4294901760
  %1526 = vmatpush.msra.mxu0 %v1525
  %v1527 = vand.u32 %v76, 4294901760
  %v1528 = vsub.f32 %v76, %v1527
  %v1529 = vand.u32 %v1528, 4294901760
  %v1530 = vsub.f32 %v1528, %v1529
  %v1531 = vand.u32 %v1530, 4294901760
  %1532 = vmatpush.msra.mxu0 %v1531
  %v1533 = vand.u32 %v74, 4294901760
  %v1534 = vsub.f32 %v74, %v1533
  %v1535 = vand.u32 %v1534, 4294901760
  %v1536 = vsub.f32 %v1534, %v1535
  %v1537 = vand.u32 %v1536, 4294901760
  %1538 = vmatpush.msra.mxu0 %v1537
  %v1539 = vand.u32 %v72, 4294901760
  %v1540 = vsub.f32 %v72, %v1539
  %v1541 = vand.u32 %v1540, 4294901760
  %v1542 = vsub.f32 %v1540, %v1541
  %v1543 = vand.u32 %v1542, 4294901760
  %1544 = vmatpush.msra.mxu0 %v1543
  %v1545 = vand.u32 %v70, 4294901760
  %v1546 = vsub.f32 %v70, %v1545
  %v1547 = vand.u32 %v1546, 4294901760
  %v1548 = vsub.f32 %v1546, %v1547
  %v1549 = vand.u32 %v1548, 4294901760
  %1550 = vmatpush.msra.mxu0 %v1549
  %v1551 = vand.u32 %v68, 4294901760
  %v1552 = vsub.f32 %v68, %v1551
  %v1553 = vand.u32 %v1552, 4294901760
  %v1554 = vsub.f32 %v1552, %v1553
  %v1555 = vand.u32 %v1554, 4294901760
  %1556 = vmatpush.msra.mxu0 %v1555
  %v1557 = vand.u32 %v66, 4294901760
  %v1558 = vsub.f32 %v66, %v1557
  %v1559 = vand.u32 %v1558, 4294901760
  %v1560 = vsub.f32 %v1558, %v1559
  %v1561 = vand.u32 %v1560, 4294901760
  %1562 = vmatpush.msra.mxu0 %v1561
  %v1563 = vand.u32 %v64, 4294901760
  %v1564 = vsub.f32 %v64, %v1563
  %v1565 = vand.u32 %v1564, 4294901760
  %v1566 = vsub.f32 %v1564, %v1565
  %v1567 = vand.u32 %v1566, 4294901760
  %1568 = vmatpush.msra.mxu0 %v1567
  %v1569 = vand.u32 %v62, 4294901760
  %v1570 = vsub.f32 %v62, %v1569
  %v1571 = vand.u32 %v1570, 4294901760
  %v1572 = vsub.f32 %v1570, %v1571
  %v1573 = vand.u32 %v1572, 4294901760
  %1574 = vmatpush.msra.mxu0 %v1573
  %v1575 = vand.u32 %v60, 4294901760
  %v1576 = vsub.f32 %v60, %v1575
  %v1577 = vand.u32 %v1576, 4294901760
  %v1578 = vsub.f32 %v1576, %v1577
  %v1579 = vand.u32 %v1578, 4294901760
  %1580 = vmatpush.msra.mxu0 %v1579
  %v1581 = vand.u32 %v58, 4294901760
  %v1582 = vsub.f32 %v58, %v1581
  %v1583 = vand.u32 %v1582, 4294901760
  %v1584 = vsub.f32 %v1582, %v1583
  %v1585 = vand.u32 %v1584, 4294901760
  %1586 = vmatpush.msra.mxu0 %v1585
  %v1587 = vand.u32 %v23, 4294901760
  %1588 = vmatmul.f32.gmra.mxu0 %v1587
  %v1589 = vpop.f32.mrf.mxu0
  %v1590 = vadd.f32 %v1489, %v1589
  %1591 = vdwg.mxu0
  %v1592 = vand.u32 %v88, 4294901760
  %v1593 = vsub.f32 %v88, %v1592
  %1594 = vmatpush.msra.mxu0 %v1593
  %v1595 = vand.u32 %v86, 4294901760
  %v1596 = vsub.f32 %v86, %v1595
  %1597 = vmatpush.msra.mxu0 %v1596
  %v1598 = vand.u32 %v84, 4294901760
  %v1599 = vsub.f32 %v84, %v1598
  %1600 = vmatpush.msra.mxu0 %v1599
  %v1601 = vand.u32 %v82, 4294901760
  %v1602 = vsub.f32 %v82, %v1601
  %1603 = vmatpush.msra.mxu0 %v1602
  %v1604 = vand.u32 %v80, 4294901760
  %v1605 = vsub.f32 %v80, %v1604
  %1606 = vmatpush.msra.mxu0 %v1605
  %v1607 = vand.u32 %v78, 4294901760
  %v1608 = vsub.f32 %v78, %v1607
  %1609 = vmatpush.msra.mxu0 %v1608
  %v1610 = vand.u32 %v76, 4294901760
  %v1611 = vsub.f32 %v76, %v1610
  %1612 = vmatpush.msra.mxu0 %v1611
  %v1613 = vand.u32 %v74, 4294901760
  %v1614 = vsub.f32 %v74, %v1613
  %1615 = vmatpush.msra.mxu0 %v1614
  %v1616 = vand.u32 %v72, 4294901760
  %v1617 = vsub.f32 %v72, %v1616
  %1618 = vmatpush.msra.mxu0 %v1617
  %v1619 = vand.u32 %v70, 4294901760
  %v1620 = vsub.f32 %v70, %v1619
  %1621 = vmatpush.msra.mxu0 %v1620
  %v1622 = vand.u32 %v68, 4294901760
  %v1623 = vsub.f32 %v68, %v1622
  %1624 = vmatpush.msra.mxu0 %v1623
  %v1625 = vand.u32 %v66, 4294901760
  %v1626 = vsub.f32 %v66, %v1625
  %1627 = vmatpush.msra.mxu0 %v1626
  %v1628 = vand.u32 %v64, 4294901760
  %v1629 = vsub.f32 %v64, %v1628
  %1630 = vmatpush.msra.mxu0 %v1629
  %v1631 = vand.u32 %v62, 4294901760
  %v1632 = vsub.f32 %v62, %v1631
  %1633 = vmatpush.msra.mxu0 %v1632
  %v1634 = vand.u32 %v60, 4294901760
  %v1635 = vsub.f32 %v60, %v1634
  %1636 = vmatpush.msra.mxu0 %v1635
  %v1637 = vand.u32 %v58, 4294901760
  %v1638 = vsub.f32 %v58, %v1637
  %1639 = vmatpush.msra.mxu0 %v1638
  %v1640 = vand.u32 %v23, 4294901760
  %v1641 = vsub.f32 %v23, %v1640
  %1642 = vmatmul.f32.gmra.mxu0 %v1641
  %v1643 = vpop.f32.mrf.mxu0
  %v1644 = vadd.f32 %v1590, %v1643
  %1645 = vdwg.mxu0
  %v1646 = vand.u32 %v88, 4294901760
  %1647 = vmatpush.msra.mxu0 %v1646
  %v1648 = vand.u32 %v86, 4294901760
  %1649 = vmatpush.msra.mxu0 %v1648
  %v1650 = vand.u32 %v84, 4294901760
  %1651 = vmatpush.msra.mxu0 %v1650
  %v1652 = vand.u32 %v82, 4294901760
  %1653 = vmatpush.msra.mxu0 %v1652
  %v1654 = vand.u32 %v80, 4294901760
  %1655 = vmatpush.msra.mxu0 %v1654
  %v1656 = vand.u32 %v78, 4294901760
  %1657 = vmatpush.msra.mxu0 %v1656
  %v1658 = vand.u32 %v76, 4294901760
  %1659 = vmatpush.msra.mxu0 %v1658
  %v1660 = vand.u32 %v74, 4294901760
  %1661 = vmatpush.msra.mxu0 %v1660
  %v1662 = vand.u32 %v72, 4294901760
  %1663 = vmatpush.msra.mxu0 %v1662
  %v1664 = vand.u32 %v70, 4294901760
  %1665 = vmatpush.msra.mxu0 %v1664
  %v1666 = vand.u32 %v68, 4294901760
  %1667 = vmatpush.msra.mxu0 %v1666
  %v1668 = vand.u32 %v66, 4294901760
  %1669 = vmatpush.msra.mxu0 %v1668
  %v1670 = vand.u32 %v64, 4294901760
  %1671 = vmatpush.msra.mxu0 %v1670
  %v1672 = vand.u32 %v62, 4294901760
  %1673 = vmatpush.msra.mxu0 %v1672
  %v1674 = vand.u32 %v60, 4294901760
  %1675 = vmatpush.msra.mxu0 %v1674
  %v1676 = vand.u32 %v58, 4294901760
  %1677 = vmatpush.msra.mxu0 %v1676
  %v1678 = vand.u32 %v23, 4294901760
  %v1679 = vsub.f32 %v23, %v1678
  %v1680 = vand.u32 %v1679, 4294901760
  %1681 = vmatmul.f32.gmra.mxu0 %v1680
  %v1682 = vpop.f32.mrf.mxu0
  %v1683 = vadd.f32 %v1644, %v1682
  %1684 = vdwg.mxu0
  %v1685 = vand.u32 %v88, 4294901760
  %v1686 = vsub.f32 %v88, %v1685
  %v1687 = vand.u32 %v1686, 4294901760
  %1688 = vmatpush.msra.mxu0 %v1687
  %v1689 = vand.u32 %v86, 4294901760
  %v1690 = vsub.f32 %v86, %v1689
  %v1691 = vand.u32 %v1690, 4294901760
  %1692 = vmatpush.msra.mxu0 %v1691
  %v1693 = vand.u32 %v84, 4294901760
  %v1694 = vsub.f32 %v84, %v1693
  %v1695 = vand.u32 %v1694, 4294901760
  %1696 = vmatpush.msra.mxu0 %v1695
  %v1697 = vand.u32 %v82, 4294901760
  %v1698 = vsub.f32 %v82, %v1697
  %v1699 = vand.u32 %v1698, 4294901760
  %1700 = vmatpush.msra.mxu0 %v1699
  %v1701 = vand.u32 %v80, 4294901760
  %v1702 = vsub.f32 %v80, %v1701
  %v1703 = vand.u32 %v1702, 4294901760
  %1704 = vmatpush.msra.mxu0 %v1703
  %v1705 = vand.u32 %v78, 4294901760
  %v1706 = vsub.f32 %v78, %v1705
  %v1707 = vand.u32 %v1706, 4294901760
  %1708 = vmatpush.msra.mxu0 %v1707
  %v1709 = vand.u32 %v76, 4294901760
  %v1710 = vsub.f32 %v76, %v1709
  %v1711 = vand.u32 %v1710, 4294901760
  %1712 = vmatpush.msra.mxu0 %v1711
  %v1713 = vand.u32 %v74, 4294901760
  %v1714 = vsub.f32 %v74, %v1713
  %v1715 = vand.u32 %v1714, 4294901760
  %1716 = vmatpush.msra.mxu0 %v1715
  %v1717 = vand.u32 %v72, 4294901760
  %v1718 = vsub.f32 %v72, %v1717
  %v1719 = vand.u32 %v1718, 4294901760
  %1720 = vmatpush.msra.mxu0 %v1719
  %v1721 = vand.u32 %v70, 4294901760
  %v1722 = vsub.f32 %v70, %v1721
  %v1723 = vand.u32 %v1722, 4294901760
  %1724 = vmatpush.msra.mxu0 %v1723
  %v1725 = vand.u32 %v68, 4294901760
  %v1726 = vsub.f32 %v68, %v1725
  %v1727 = vand.u32 %v1726, 4294901760
  %1728 = vmatpush.msra.mxu0 %v1727
  %v1729 = vand.u32 %v66, 4294901760
  %v1730 = vsub.f32 %v66, %v1729
  %v1731 = vand.u32 %v1730, 4294901760
  %1732 = vmatpush.msra.mxu0 %v1731
  %v1733 = vand.u32 %v64, 4294901760
  %v1734 = vsub.f32 %v64, %v1733
  %v1735 = vand.u32 %v1734, 4294901760
  %1736 = vmatpush.msra.mxu0 %v1735
  %v1737 = vand.u32 %v62, 4294901760
  %v1738 = vsub.f32 %v62, %v1737
  %v1739 = vand.u32 %v1738, 4294901760
  %1740 = vmatpush.msra.mxu0 %v1739
  %v1741 = vand.u32 %v60, 4294901760
  %v1742 = vsub.f32 %v60, %v1741
  %v1743 = vand.u32 %v1742, 4294901760
  %1744 = vmatpush.msra.mxu0 %v1743
  %v1745 = vand.u32 %v58, 4294901760
  %v1746 = vsub.f32 %v58, %v1745
  %v1747 = vand.u32 %v1746, 4294901760
  %1748 = vmatpush.msra.mxu0 %v1747
  %v1749 = vand.u32 %v23, 4294901760
  %1750 = vmatmul.f32.gmra.mxu0 %v1749
  %v1751 = vpop.f32.mrf.mxu0
  %v1752 = vadd.f32 %v1683, %v1751
  %1753 = vdwg.mxu0
  %v1754 = vand.u32 %v88, 4294901760
  %1755 = vmatpush.msra.mxu0 %v1754
  %v1756 = vand.u32 %v86, 4294901760
  %1757 = vmatpush.msra.mxu0 %v1756
  %v1758 = vand.u32 %v84, 4294901760
  %1759 = vmatpush.msra.mxu0 %v1758
  %v1760 = vand.u32 %v82, 4294901760
  %1761 = vmatpush.msra.mxu0 %v1760
  %v1762 = vand.u32 %v80, 4294901760
  %1763 = vmatpush.msra.mxu0 %v1762
  %v1764 = vand.u32 %v78, 4294901760
  %1765 = vmatpush.msra.mxu0 %v1764
  %v1766 = vand.u32 %v76, 4294901760
  %1767 = vmatpush.msra.mxu0 %v1766
  %v1768 = vand.u32 %v74, 4294901760
  %1769 = vmatpush.msra.mxu0 %v1768
  %v1770 = vand.u32 %v72, 4294901760
  %1771 = vmatpush.msra.mxu0 %v1770
  %v1772 = vand.u32 %v70, 4294901760
  %1773 = vmatpush.msra.mxu0 %v1772
  %v1774 = vand.u32 %v68, 4294901760
  %1775 = vmatpush.msra.mxu0 %v1774
  %v1776 = vand.u32 %v66, 4294901760
  %1777 = vmatpush.msra.mxu0 %v1776
  %v1778 = vand.u32 %v64, 4294901760
  %1779 = vmatpush.msra.mxu0 %v1778
  %v1780 = vand.u32 %v62, 4294901760
  %1781 = vmatpush.msra.mxu0 %v1780
  %v1782 = vand.u32 %v60, 4294901760
  %1783 = vmatpush.msra.mxu0 %v1782
  %v1784 = vand.u32 %v58, 4294901760
  %1785 = vmatpush.msra.mxu0 %v1784
  %v1786 = vand.u32 %v23, 4294901760
  %1787 = vmatmul.f32.gmra.mxu0 %v1786
  %v1788 = vpop.f32.mrf.mxu0
  %v1789 = vadd.f32 %v1752, %v1788
  %1790 = vdwg.mxu0
  %1791 = vmatpush.msra.mxu0 0.0
  %1792 = vmatpush.msra.mxu0 0.0
  %1793 = vmatpush.msra.mxu0 0.0
  %v1794 = vand.u32 %v114, 4294901760
  %1795 = vmatpush.msra.mxu0 %v1794
  %v1796 = vand.u32 %v112, 4294901760
  %1797 = vmatpush.msra.mxu0 %v1796
  %v1798 = vand.u32 %v110, 4294901760
  %1799 = vmatpush.msra.mxu0 %v1798
  %v1800 = vand.u32 %v108, 4294901760
  %1801 = vmatpush.msra.mxu0 %v1800
  %v1802 = vand.u32 %v106, 4294901760
  %1803 = vmatpush.msra.mxu0 %v1802
  %v1804 = vand.u32 %v104, 4294901760
  %1805 = vmatpush.msra.mxu0 %v1804
  %v1806 = vand.u32 %v102, 4294901760
  %1807 = vmatpush.msra.mxu0 %v1806
  %v1808 = vand.u32 %v100, 4294901760
  %1809 = vmatpush.msra.mxu0 %v1808
  %v1810 = vand.u32 %v98, 4294901760
  %1811 = vmatpush.msra.mxu0 %v1810
  %v1812 = vand.u32 %v96, 4294901760
  %1813 = vmatpush.msra.mxu0 %v1812
  %v1814 = vand.u32 %v94, 4294901760
  %1815 = vmatpush.msra.mxu0 %v1814
  %v1816 = vand.u32 %v92, 4294901760
  %1817 = vmatpush.msra.mxu0 %v1816
  %v1818 = vand.u32 %v90, 4294901760
  %1819 = vmatpush.msra.mxu0 %v1818
  %v1820 = vand.u32 %v123, 4294901760
  %v1821 = vsub.f32 %v123, %v1820
  %v1822 = vand.u32 %v1821, 4294901760
  %v1823 = vsub.f32 %v1821, %v1822
  %v1824 = vand.u32 %v1823, 4294901760
  %1825 = vmatmul.f32.gmra.mxu0 %v1824
  %v1826 = vpop.f32.mrf.mxu0
  %v1827 = vadd.f32 %v1789, %v1826
  %1828 = vdwg.mxu0
  %1829 = vmatpush.msra.mxu0 0.0
  %1830 = vmatpush.msra.mxu0 0.0
  %1831 = vmatpush.msra.mxu0 0.0
  %v1832 = vand.u32 %v114, 4294901760
  %v1833 = vsub.f32 %v114, %v1832
  %v1834 = vand.u32 %v1833, 4294901760
  %v1835 = vsub.f32 %v1833, %v1834
  %v1836 = vand.u32 %v1835, 4294901760
  %1837 = vmatpush.msra.mxu0 %v1836
  %v1838 = vand.u32 %v112, 4294901760
  %v1839 = vsub.f32 %v112, %v1838
  %v1840 = vand.u32 %v1839, 4294901760
  %v1841 = vsub.f32 %v1839, %v1840
  %v1842 = vand.u32 %v1841, 4294901760
  %1843 = vmatpush.msra.mxu0 %v1842
  %v1844 = vand.u32 %v110, 4294901760
  %v1845 = vsub.f32 %v110, %v1844
  %v1846 = vand.u32 %v1845, 4294901760
  %v1847 = vsub.f32 %v1845, %v1846
  %v1848 = vand.u32 %v1847, 4294901760
  %1849 = vmatpush.msra.mxu0 %v1848
  %v1850 = vand.u32 %v108, 4294901760
  %v1851 = vsub.f32 %v108, %v1850
  %v1852 = vand.u32 %v1851, 4294901760
  %v1853 = vsub.f32 %v1851, %v1852
  %v1854 = vand.u32 %v1853, 4294901760
  %1855 = vmatpush.msra.mxu0 %v1854
  %v1856 = vand.u32 %v106, 4294901760
  %v1857 = vsub.f32 %v106, %v1856
  %v1858 = vand.u32 %v1857, 4294901760
  %v1859 = vsub.f32 %v1857, %v1858
  %v1860 = vand.u32 %v1859, 4294901760
  %1861 = vmatpush.msra.mxu0 %v1860
  %v1862 = vand.u32 %v104, 4294901760
  %v1863 = vsub.f32 %v104, %v1862
  %v1864 = vand.u32 %v1863, 4294901760
  %v1865 = vsub.f32 %v1863, %v1864
  %v1866 = vand.u32 %v1865, 4294901760
  %1867 = vmatpush.msra.mxu0 %v1866
  %v1868 = vand.u32 %v102, 4294901760
  %v1869 = vsub.f32 %v102, %v1868
  %v1870 = vand.u32 %v1869, 4294901760
  %v1871 = vsub.f32 %v1869, %v1870
  %v1872 = vand.u32 %v1871, 4294901760
  %1873 = vmatpush.msra.mxu0 %v1872
  %v1874 = vand.u32 %v100, 4294901760
  %v1875 = vsub.f32 %v100, %v1874
  %v1876 = vand.u32 %v1875, 4294901760
  %v1877 = vsub.f32 %v1875, %v1876
  %v1878 = vand.u32 %v1877, 4294901760
  %1879 = vmatpush.msra.mxu0 %v1878
  %v1880 = vand.u32 %v98, 4294901760
  %v1881 = vsub.f32 %v98, %v1880
  %v1882 = vand.u32 %v1881, 4294901760
  %v1883 = vsub.f32 %v1881, %v1882
  %v1884 = vand.u32 %v1883, 4294901760
  %1885 = vmatpush.msra.mxu0 %v1884
  %v1886 = vand.u32 %v96, 4294901760
  %v1887 = vsub.f32 %v96, %v1886
  %v1888 = vand.u32 %v1887, 4294901760
  %v1889 = vsub.f32 %v1887, %v1888
  %v1890 = vand.u32 %v1889, 4294901760
  %1891 = vmatpush.msra.mxu0 %v1890
  %v1892 = vand.u32 %v94, 4294901760
  %v1893 = vsub.f32 %v94, %v1892
  %v1894 = vand.u32 %v1893, 4294901760
  %v1895 = vsub.f32 %v1893, %v1894
  %v1896 = vand.u32 %v1895, 4294901760
  %1897 = vmatpush.msra.mxu0 %v1896
  %v1898 = vand.u32 %v92, 4294901760
  %v1899 = vsub.f32 %v92, %v1898
  %v1900 = vand.u32 %v1899, 4294901760
  %v1901 = vsub.f32 %v1899, %v1900
  %v1902 = vand.u32 %v1901, 4294901760
  %1903 = vmatpush.msra.mxu0 %v1902
  %v1904 = vand.u32 %v90, 4294901760
  %v1905 = vsub.f32 %v90, %v1904
  %v1906 = vand.u32 %v1905, 4294901760
  %v1907 = vsub.f32 %v1905, %v1906
  %v1908 = vand.u32 %v1907, 4294901760
  %1909 = vmatpush.msra.mxu0 %v1908
  %v1910 = vand.u32 %v123, 4294901760
  %1911 = vmatmul.f32.gmra.mxu0 %v1910
  %v1912 = vpop.f32.mrf.mxu0
  %v1913 = vadd.f32 %v1827, %v1912
  %1914 = vdwg.mxu0
  %1915 = vmatpush.msra.mxu0 0.0
  %1916 = vmatpush.msra.mxu0 0.0
  %1917 = vmatpush.msra.mxu0 0.0
  %v1918 = vand.u32 %v114, 4294901760
  %v1919 = vsub.f32 %v114, %v1918
  %1920 = vmatpush.msra.mxu0 %v1919
  %v1921 = vand.u32 %v112, 4294901760
  %v1922 = vsub.f32 %v112, %v1921
  %1923 = vmatpush.msra.mxu0 %v1922
  %v1924 = vand.u32 %v110, 4294901760
  %v1925 = vsub.f32 %v110, %v1924
  %1926 = vmatpush.msra.mxu0 %v1925
  %v1927 = vand.u32 %v108, 4294901760
  %v1928 = vsub.f32 %v108, %v1927
  %1929 = vmatpush.msra.mxu0 %v1928
  %v1930 = vand.u32 %v106, 4294901760
  %v1931 = vsub.f32 %v106, %v1930
  %1932 = vmatpush.msra.mxu0 %v1931
  %v1933 = vand.u32 %v104, 4294901760
  %v1934 = vsub.f32 %v104, %v1933
  %1935 = vmatpush.msra.mxu0 %v1934
  %v1936 = vand.u32 %v102, 4294901760
  %v1937 = vsub.f32 %v102, %v1936
  %1938 = vmatpush.msra.mxu0 %v1937
  %v1939 = vand.u32 %v100, 4294901760
  %v1940 = vsub.f32 %v100, %v1939
  %1941 = vmatpush.msra.mxu0 %v1940
  %v1942 = vand.u32 %v98, 4294901760
  %v1943 = vsub.f32 %v98, %v1942
  %1944 = vmatpush.msra.mxu0 %v1943
  %v1945 = vand.u32 %v96, 4294901760
  %v1946 = vsub.f32 %v96, %v1945
  %1947 = vmatpush.msra.mxu0 %v1946
  %v1948 = vand.u32 %v94, 4294901760
  %v1949 = vsub.f32 %v94, %v1948
  %1950 = vmatpush.msra.mxu0 %v1949
  %v1951 = vand.u32 %v92, 4294901760
  %v1952 = vsub.f32 %v92, %v1951
  %1953 = vmatpush.msra.mxu0 %v1952
  %v1954 = vand.u32 %v90, 4294901760
  %v1955 = vsub.f32 %v90, %v1954
  %1956 = vmatpush.msra.mxu0 %v1955
  %v1957 = vand.u32 %v123, 4294901760
  %v1958 = vsub.f32 %v123, %v1957
  %1959 = vmatmul.f32.gmra.mxu0 %v1958
  %v1960 = vpop.f32.mrf.mxu0
  %v1961 = vadd.f32 %v1913, %v1960
  %1962 = vdwg.mxu0
  %1963 = vmatpush.msra.mxu0 0.0
  %1964 = vmatpush.msra.mxu0 0.0
  %1965 = vmatpush.msra.mxu0 0.0
  %v1966 = vand.u32 %v114, 4294901760
  %1967 = vmatpush.msra.mxu0 %v1966
  %v1968 = vand.u32 %v112, 4294901760
  %1969 = vmatpush.msra.mxu0 %v1968
  %v1970 = vand.u32 %v110, 4294901760
  %1971 = vmatpush.msra.mxu0 %v1970
  %v1972 = vand.u32 %v108, 4294901760
  %1973 = vmatpush.msra.mxu0 %v1972
  %v1974 = vand.u32 %v106, 4294901760
  %1975 = vmatpush.msra.mxu0 %v1974
  %v1976 = vand.u32 %v104, 4294901760
  %1977 = vmatpush.msra.mxu0 %v1976
  %v1978 = vand.u32 %v102, 4294901760
  %1979 = vmatpush.msra.mxu0 %v1978
  %v1980 = vand.u32 %v100, 4294901760
  %1981 = vmatpush.msra.mxu0 %v1980
  %v1982 = vand.u32 %v98, 4294901760
  %1983 = vmatpush.msra.mxu0 %v1982
  %v1984 = vand.u32 %v96, 4294901760
  %1985 = vmatpush.msra.mxu0 %v1984
  %v1986 = vand.u32 %v94, 4294901760
  %1987 = vmatpush.msra.mxu0 %v1986
  %v1988 = vand.u32 %v92, 4294901760
  %1989 = vmatpush.msra.mxu0 %v1988
  %v1990 = vand.u32 %v90, 4294901760
  %1991 = vmatpush.msra.mxu0 %v1990
  %v1992 = vand.u32 %v123, 4294901760
  %v1993 = vsub.f32 %v123, %v1992
  %v1994 = vand.u32 %v1993, 4294901760
  %1995 = vmatmul.f32.gmra.mxu0 %v1994
  %v1996 = vpop.f32.mrf.mxu0
  %v1997 = vadd.f32 %v1961, %v1996
  %1998 = vdwg.mxu0
  %1999 = vmatpush.msra.mxu0 0.0
  %2000 = vmatpush.msra.mxu0 0.0
  %2001 = vmatpush.msra.mxu0 0.0
  %v2002 = vand.u32 %v114, 4294901760
  %v2003 = vsub.f32 %v114, %v2002
  %v2004 = vand.u32 %v2003, 4294901760
  %2005 = vmatpush.msra.mxu0 %v2004
  %v2006 = vand.u32 %v112, 4294901760
  %v2007 = vsub.f32 %v112, %v2006
  %v2008 = vand.u32 %v2007, 4294901760
  %2009 = vmatpush.msra.mxu0 %v2008
  %v2010 = vand.u32 %v110, 4294901760
  %v2011 = vsub.f32 %v110, %v2010
  %v2012 = vand.u32 %v2011, 4294901760
  %2013 = vmatpush.msra.mxu0 %v2012
  %v2014 = vand.u32 %v108, 4294901760
  %v2015 = vsub.f32 %v108, %v2014
  %v2016 = vand.u32 %v2015, 4294901760
  %2017 = vmatpush.msra.mxu0 %v2016
  %v2018 = vand.u32 %v106, 4294901760
  %v2019 = vsub.f32 %v106, %v2018
  %v2020 = vand.u32 %v2019, 4294901760
  %2021 = vmatpush.msra.mxu0 %v2020
  %v2022 = vand.u32 %v104, 4294901760
  %v2023 = vsub.f32 %v104, %v2022
  %v2024 = vand.u32 %v2023, 4294901760
  %2025 = vmatpush.msra.mxu0 %v2024
  %v2026 = vand.u32 %v102, 4294901760
  %v2027 = vsub.f32 %v102, %v2026
  %v2028 = vand.u32 %v2027, 4294901760
  %2029 = vmatpush.msra.mxu0 %v2028
  %v2030 = vand.u32 %v100, 4294901760
  %v2031 = vsub.f32 %v100, %v2030
  %v2032 = vand.u32 %v2031, 4294901760
  %2033 = vmatpush.msra.mxu0 %v2032
  %v2034 = vand.u32 %v98, 4294901760
  %v2035 = vsub.f32 %v98, %v2034
  %v2036 = vand.u32 %v2035, 4294901760
  %2037 = vmatpush.msra.mxu0 %v2036
  %v2038 = vand.u32 %v96, 4294901760
  %v2039 = vsub.f32 %v96, %v2038
  %v2040 = vand.u32 %v2039, 4294901760
  %2041 = vmatpush.msra.mxu0 %v2040
  %v2042 = vand.u32 %v94, 4294901760
  %v2043 = vsub.f32 %v94, %v2042
  %v2044 = vand.u32 %v2043, 4294901760
  %2045 = vmatpush.msra.mxu0 %v2044
  %v2046 = vand.u32 %v92, 4294901760
  %v2047 = vsub.f32 %v92, %v2046
  %v2048 = vand.u32 %v2047, 4294901760
  %2049 = vmatpush.msra.mxu0 %v2048
  %v2050 = vand.u32 %v90, 4294901760
  %v2051 = vsub.f32 %v90, %v2050
  %v2052 = vand.u32 %v2051, 4294901760
  %2053 = vmatpush.msra.mxu0 %v2052
  %v2054 = vand.u32 %v123, 4294901760
  %2055 = vmatmul.f32.gmra.mxu0 %v2054
  %v2056 = vpop.f32.mrf.mxu0
  %v2057 = vadd.f32 %v1997, %v2056
  %2058 = vdwg.mxu0
  %2059 = vmatpush.msra.mxu0 0.0
  %2060 = vmatpush.msra.mxu0 0.0
  %2061 = vmatpush.msra.mxu0 0.0
  %v2062 = vand.u32 %v114, 4294901760
  %2063 = vmatpush.msra.mxu0 %v2062
  %v2064 = vand.u32 %v112, 4294901760
  %2065 = vmatpush.msra.mxu0 %v2064
  %v2066 = vand.u32 %v110, 4294901760
  %2067 = vmatpush.msra.mxu0 %v2066
  %v2068 = vand.u32 %v108, 4294901760
  %2069 = vmatpush.msra.mxu0 %v2068
  %v2070 = vand.u32 %v106, 4294901760
  %2071 = vmatpush.msra.mxu0 %v2070
  %v2072 = vand.u32 %v104, 4294901760
  %2073 = vmatpush.msra.mxu0 %v2072
  %v2074 = vand.u32 %v102, 4294901760
  %2075 = vmatpush.msra.mxu0 %v2074
  %v2076 = vand.u32 %v100, 4294901760
  %2077 = vmatpush.msra.mxu0 %v2076
  %v2078 = vand.u32 %v98, 4294901760
  %2079 = vmatpush.msra.mxu0 %v2078
  %v2080 = vand.u32 %v96, 4294901760
  %2081 = vmatpush.msra.mxu0 %v2080
  %v2082 = vand.u32 %v94, 4294901760
  %2083 = vmatpush.msra.mxu0 %v2082
  %v2084 = vand.u32 %v92, 4294901760
  %2085 = vmatpush.msra.mxu0 %v2084
  %v2086 = vand.u32 %v90, 4294901760
  %2087 = vmatpush.msra.mxu0 %v2086
  %v2088 = vand.u32 %v123, 4294901760
  %2089 = vmatmul.f32.gmra.mxu0 %v2088
  %v2090 = vpop.f32.mrf.mxu0
  %v2091 = vadd.f32 %v2057, %v2090
  %2092 = vdwg.mxu0
  %v2093 = vmul.f32 %v1107, 0.5
  %v2094 = vmul.f32 %v2091, 0.5
  %v2095 = vmul.f32 %v1107, 0.70710677
  %v2096 = vmul.f32 %v2091, 0.70710677
  %v2097 = vmul.f32 %v2095, %v2095
  %v2098 = vmin.f32 16.0, %v2097
  %v2099 = vmul.f32 %v2098, 2.1237322e-06
  %v2100 = vadd.f32 %v2099, 0.00028619796
  %v2101 = vmul.f32 %v2098, %v2100
  %v2102 = vadd.f32 %v2101, 0.0036580483
  %v2103 = vmul.f32 %v2098, %v2102
  %v2104 = vadd.f32 %v2103, 0.05243302
  %v2105 = vmul.f32 %v2098, %v2104
  %v2106 = vadd.f32 %v2105, 0.18741608
  %v2107 = vmul.f32 %v2098, %v2106
  %v2108 = vadd.f32 %v2107, 1.1283791
  %v2109 = vmul.f32 %v2095, %v2108
  %v2110 = vmul.f32 %v2098, 3.8918573e-05
  %v2111 = vadd.f32 %v2110, 0.001143296
  %v2112 = vmul.f32 %v2098, %v2111
  %v2113 = vadd.f32 %v2112, 0.014752088
  %v2114 = vmul.f32 %v2098, %v2113
  %v2115 = vadd.f32 %v2114, 0.112945676
  %v2116 = vmul.f32 %v2098, %v2115
  %v2117 = vadd.f32 %v2116, 0.4994258
  %v2118 = vmul.f32 %v2098, %v2117
  %v2119 = vadd.f32 %v2118, 1.0
  %v2120 = vrcp.pop %v2119
  %v2121 = vmul.f32 %v2119, %v2120
  %v2122 = vsub.f32 1.0, %v2121
  %v2123 = vmul.f32 %v2120, %v2122
  %v2124 = vadd.f32 %v2120, %v2123
  %vm2125 = vweird.f32 %v2119
  %vm2126 = vweird.f32 %v2120
  %vm2127 = vmor %vm2125, %vm2126
  %v2128 = vsel %vm2127, %v2120, %v2124
  %v2129 = vand.u32 2147483647, %v2119
  %vm2130 = vcmp.eq.f32.partialorder %v2129, 8.507059e+37
  %v2131 = vand.u32 %v2119, 2147483648
  %v2132 = vor.u32 1.1754944e-38, %v2131
  %v2133 = vsel %vm2130, %v2132, %v2128
  %v2134 = vmul.f32 %v2109, %v2133
  %v2135 = vmin.f32 %v2134, 1.0
  %v2136 = vmax.f32 %v2135, -1.0
  %v2137 = vmul.f32 %v2096, %v2096
  %v2138 = vmin.f32 16.0, %v2137
  %v2139 = vmul.f32 %v2138, 2.1237322e-06
  %v2140 = vadd.f32 %v2139, 0.00028619796
  %v2141 = vmul.f32 %v2138, %v2140
  %v2142 = vadd.f32 %v2141, 0.0036580483
  %v2143 = vmul.f32 %v2138, %v2142
  %v2144 = vadd.f32 %v2143, 0.05243302
  %v2145 = vmul.f32 %v2138, %v2144
  %v2146 = vadd.f32 %v2145, 0.18741608
  %v2147 = vmul.f32 %v2138, %v2146
  %v2148 = vadd.f32 %v2147, 1.1283791
  %v2149 = vmul.f32 %v2096, %v2148
  %v2150 = vmul.f32 %v2138, 3.8918573e-05
  %v2151 = vadd.f32 %v2150, 0.001143296
  %v2152 = vmul.f32 %v2138, %v2151
  %v2153 = vadd.f32 %v2152, 0.014752088
  %v2154 = vmul.f32 %v2138, %v2153
  %v2155 = vadd.f32 %v2154, 0.112945676
  %v2156 = vmul.f32 %v2138, %v2155
  %v2157 = vadd.f32 %v2156, 0.4994258
  %v2158 = vmul.f32 %v2138, %v2157
  %v2159 = vadd.f32 %v2158, 1.0
  %v2160 = vrcp.pop %v2159
  %v2161 = vmul.f32 %v2159, %v2160
  %v2162 = vsub.f32 1.0, %v2161
  %v2163 = vmul.f32 %v2160, %v2162
  %v2164 = vadd.f32 %v2160, %v2163
  %vm2165 = vweird.f32 %v2159
  %vm2166 = vweird.f32 %v2160
  %vm2167 = vmor %vm2165, %vm2166
  %v2168 = vsel %vm2167, %v2160, %v2164
  %v2169 = vand.u32 2147483647, %v2159
  %vm2170 = vcmp.eq.f32.partialorder %v2169, 8.507059e+37
  %v2171 = vand.u32 %v2159, 2147483648
  %v2172 = vor.u32 1.1754944e-38, %v2171
  %v2173 = vsel %vm2170, %v2172, %v2168
  %v2174 = vmul.f32 %v2149, %v2173
  %v2175 = vmin.f32 %v2174, 1.0
  %v2176 = vmax.f32 %v2175, -1.0
  %v2177 = vadd.f32 %v2136, 1.0
  %v2178 = vadd.f32 %v2176, 1.0
  %v2179 = vmul.f32 %v2093, %v2177
  %v2180 = vmul.f32 %v2094, %v2178
  %v2181 = vld [vmem:[%s3] sm:$0x3]
  %v2183 = vperm.slane %v2181, 0
  %v2184 = vperm.slane %v2181, 1
  %v2187 = vmul.f32 %v2179, %v2183
  %v2188 = vmul.f32 %v2180, %v2184
  %v2189 = vadd.f32 %v2187, %v2188
  %2190 = vadd.xlane.f32.xlu0 %v2189
  %v2191 = vpop.xlane.xlu0 %2190
  %v2192 = vld [vmem:[#allocation2] sm:$0x1]
  %v2194 = vperm.slane %v2192, 0
  %v2196 = vadd.f32 %v2191, %v2194
  %vm2197 = vcmask 7168
  %2198 = vst.msk [vmem:[%s5] sm:$0xff] %vm2197, %v2196
  // Predicated region
  $region22: #{fc3_forward.1} parent=0 // pred_check
    _
  $region23: #{fc3_forward.1} parent=0 // pred_check_branch
    %2200 = sbr.rel (0) target = $region25
  $region24: #{fc3_forward.1} parent=0 // pred_region
    _
  $region25: #{fc3_forward.1} parent=0 // pred_fallthru
    _
  // Predicated region
  $region26: #{fc3_forward.1} parent=0 // pred_check
    _
  $region27: #{fc3_forward.1} parent=0 // pred_check_branch
    %2202 = sbr.rel (0) target = $region29
  $region28: #{fc3_forward.1} parent=0 // pred_region
    _
  $region29: #{fc3_forward.1} parent=0 // pred_fallthru
    _

</llo_original>
